<compile_context>
chip_gen: v7x
topology: tpu7x:2x2x1
jax: 0.10.0
libtpu: 0.0.40
codegen_flags: <defaults>
</compile_context>

<pallas_src>
import functools
import math

import jax
import jax.numpy as jnp
import numpy as np
from jax.experimental import pallas as pl
from jax.experimental.pallas import tpu as pltpu


# --------------------------------------------------------------------------------------
# Diffusion-embedding kernel (GaussianFourierProjection -> Linear -> SiLU -> Linear -> SiLU)
# --------------------------------------------------------------------------------------

def _diffusion_embedding_kernel(t_ref, wg_ref, w1_ref, b1_ref, w2_ref, b2_ref, out_ref):
    """t_ref: (B, 1)  wg_ref: (1, E//2)  w*: (E, E)  b*: (1, E)  out: (B, E)"""
    t = t_ref[...]                                        # (B, 1)
    proj = t * wg_ref[...] * (2.0 * np.pi)                # (B, E//2)
    sin_p = jnp.sin(proj)
    cos_p = jnp.cos(proj)
    e2 = wg_ref.shape[1]
    # femb = concat([sin, cos], -1); folded into two half-matmuls (avoids in-kernel concat)
    h = (jnp.dot(sin_p, w1_ref[:e2, :], preferred_element_type=jnp.float32)
         + jnp.dot(cos_p, w1_ref[e2:, :], preferred_element_type=jnp.float32)
         + b1_ref[...])
    h = h * jax.nn.sigmoid(h)                             # SiLU
    h = jnp.dot(h, w2_ref[...], preferred_element_type=jnp.float32) + b2_ref[...]
    out_ref[...] = h * jax.nn.sigmoid(h)                  # SiLU


def diffusion_embedding(t, p):
    B = t.shape[0]
    E = p["emb_w1"].shape[0]
    t2 = t.reshape(B, 1).astype(jnp.float32)
    return pl.pallas_call(
        _diffusion_embedding_kernel,
        out_shape=jax.ShapeDtypeStruct((B, E), jnp.float32),
        grid=(1,),
        in_specs=[
            pl.BlockSpec((B, 1), lambda i: (0, 0)),
            pl.BlockSpec((1, E // 2), lambda i: (0, 0)),
            pl.BlockSpec((E, E), lambda i: (0, 0)),
            pl.BlockSpec((1, E), lambda i: (0, 0)),
            pl.BlockSpec((E, E), lambda i: (0, 0)),
            pl.BlockSpec((1, E), lambda i: (0, 0)),
        ],
        out_specs=pl.BlockSpec((B, E), lambda i: (0, 0)),
    )(t2, p["gfp_w"], p["emb_w1"], p["emb_b1"], p["emb_w2"], p["emb_b2"])


# --------------------------------------------------------------------------------------
# Fused residual stack + skip accumulation + output head
# --------------------------------------------------------------------------------------

def _layernorm(y, gamma, beta, eps=1e-5):
    mean = jnp.mean(y, axis=-1, keepdims=True)
    yc = y - mean                                  # centered value computed once, reused
    var = jnp.mean(yc * yc, axis=-1, keepdims=True)
    return yc * jax.lax.rsqrt(var + eps) * gamma + beta


def _stack_kernel(x_ref, demb_ref, inw_ref, inb_ref,
                  win_ref, bin_ref,
                  g1_ref, be1_ref, g2_ref, be2_ref,
                  wout_ref, bout_ref,
                  o1w_ref, o1b_ref, o2w_ref, o2b_ref,
                  scale_ref,
                  out_ref,
                  x_sc, skip_sc,
                  *, inv_sqrt_depth):
    """Grid: (batch, L_tiles, layer) with layer innermost ("arbitrary").

    All per-layer weights are full stacked tensors resident in VMEM (constant index_map)
    and indexed with ref[layer] here.  x_sc / skip_sc scratch persist across the layer axis.
    """
    b = pl.program_id(0)
    layer = pl.program_id(2)
    n_layers = pl.num_programs(2)
    C = x_sc.shape[-1]

    @pl.when(layer == 0)
    def _():
        # Fused input_projection: Conv1d(in_chn, C, 1) with the NCL->NLC transpose folded in.
        xin = x_ref[0]                                    # (Cin, LT) f32
        x0 = jax.lax.dot_general(
            xin.astype(jnp.bfloat16), inw_ref[...],
            dimension_numbers=(((0,), (0,)), ((), ())),
            preferred_element_type=jnp.float32)           # (LT, C)
        x_sc[...] = x0 + inb_ref[...]
        skip_sc[...] = jnp.zeros_like(skip_sc)

    x = x_sc[...]                                         # (LT, C) f32

    # Hoisted diffusion projection: precomputed per (batch, layer) outside the kernel.
    d = demb_ref[b * n_layers + layer]                    # (1, C)
    y = x + d                                             # broadcast along L

    # input_projection: Conv1d(C, 2C, 1) == channel matmul (bf16 MXU, f32 acc)
    y = jnp.dot(y.astype(jnp.bfloat16), win_ref[layer],
                preferred_element_type=jnp.float32) + bin_ref[layer]   # (LT, 2C)

    # TODO(synk): S4_1 / S4_2 layer class is not provided in the reference source;
    #             treated as identity (only the LayerNorms are applied).
    y = _layernorm(y, g1_ref[layer], be1_ref[layer])
    y = _layernorm(y, g2_ref[layer], be2_ref[layer])

    # chunk along channels: gate = first C channels, filter = last C channels
    gate = y[:, :C]
    filt = y[:, C:]
    y = jax.nn.sigmoid(gate) * jnp.tanh(filt)             # (LT, C) f32

    # output_projection: Conv1d(C, 2C, 1)
    y = jnp.dot(y.astype(jnp.bfloat16), wout_ref[layer],
                preferred_element_type=jnp.float32) + bout_ref[layer]  # (LT, 2C)
    residual = y[:, :C]
    skip = y[:, C:]

    x_sc[...] = (x + residual) * (1.0 / math.sqrt(2.0))
    skip_sc[...] = skip_sc[...] + skip

    # Output head fused into the last layer; lane-dense (L on lanes) output block.
    @pl.when(layer == n_layers - 1)
    def _():
        s = skip_sc[...] * inv_sqrt_depth                 # sum_skip / sqrt(depth), (LT, C)
        h = jnp.dot(s.astype(jnp.bfloat16), o1w_ref[...],
                    preferred_element_type=jnp.float32) + o1b_ref[...]
        h = jnp.maximum(h, 0.0)                           # ReLU
        # output_projection2 computed transposed: (in_chn, C) x (LT, C)^T -> (in_chn, LT)
        o = jax.lax.dot_general(
            o2w_ref[...], h.astype(jnp.bfloat16),
            dimension_numbers=(((1,), (1,)), ((), ())),
            preferred_element_type=jnp.float32)           # (in_chn, LT)
        out_ref[0] = (o + o2b_ref[...]) * scale_ref[b]    # / sqrt(beta(t)), scalar from SMEM


def _pick_seq_tile(L, max_tile=2048):
    """L tile: full L if small, else the largest multiple-of-128 divisor <= max_tile."""
    if L <= max_tile:
        return L
    for t in range(max_tile - (max_tile % 128), 127, -128):
        if L % t == 0:
            return t
    return L   # TODO(synk): pad/mask for L with no suitable divisor


def residual_stack(x_ncl, demb, inv_sqrt_beta, p):
    """Fused depth-loop residual blocks + output head. Returns (B, in_chn, L) in NCL."""
    B, Cin, L = x_ncl.shape
    depth, C, C2 = p["win"].shape
    in_chn = p["out2_w"].shape[0]
    LT = _pick_seq_tile(L)
    n_lt = L // LT

    def const(a):
        # full array resident in VMEM, constant block index -> fetched once, never re-DMA'd
        shape = tuple(a.shape)
        return pl.BlockSpec(shape, lambda b, l, k: (0,) * len(shape))

    kernel = functools.partial(_stack_kernel, inv_sqrt_depth=1.0 / math.sqrt(depth))

    # VMEM budget: resident weights/tables + double-buffered streamed blocks + scratch.
    resident = [demb, p["in_proj_w"], p["in_proj_b"], p["win"], p["bin"],
                p["g1"], p["be1"], p["g2"], p["be2"], p["wout"], p["bout"],
                p["out1_w"], p["out1_b"], p["out2_w"], p["out2_b"]]
    est = sum(int(np.prod(a.shape)) * a.dtype.itemsize for a in resident)
    est += 2 * (Cin * LT * 4 + in_chn * LT * 4)     # streamed x / out blocks (double-buffered)
    est += 2 * LT * C * 4                           # x_sc + skip_sc scratch
    # Explicit limit with headroom; capped well inside v7x's 64 MiB physical VMEM.
    vmem_limit = int(min(max(3 * est, 16 * 2 ** 20), 48 * 2 ** 20))

    return pl.pallas_call(
        kernel,
        out_shape=jax.ShapeDtypeStruct((B, in_chn, L), jnp.float32),
        grid=(B, n_lt, depth),
        in_specs=[
            pl.BlockSpec((1, Cin, LT), lambda b, l, k: (b, 0, l)),   # x in NCL (read @ layer 0)
            const(demb),                                             # (B*depth, 1, C) diff. proj
            const(p["in_proj_w"]), const(p["in_proj_b"]),
            const(p["win"]), const(p["bin"]),
            const(p["g1"]), const(p["be1"]), const(p["g2"]), const(p["be2"]),
            const(p["wout"]), const(p["bout"]),
            const(p["out1_w"]), const(p["out1_b"]),
            const(p["out2_w"]), const(p["out2_b"]),
            pl.BlockSpec(memory_space=pltpu.MemorySpace.SMEM),       # 1/sqrt(beta(t)) per batch
        ],
        out_specs=pl.BlockSpec((1, in_chn, LT), lambda b, l, k: (b, 0, l)),
        scratch_shapes=[
            pltpu.VMEM((LT, C), jnp.float32),   # x, resident across layers
            pltpu.VMEM((LT, C), jnp.float32),   # sum_skip, resident across layers
        ],
        compiler_params=pltpu.CompilerParams(
            dimension_semantics=("parallel", "parallel", "arbitrary"),
            vmem_limit_bytes=vmem_limit),
    )(x_ncl, demb,
      p["in_proj_w"], p["in_proj_b"],
      p["win"], p["bin"],
      p["g1"], p["be1"], p["g2"], p["be2"],
      p["wout"], p["bout"],
      p["out1_w"], p["out1_b"], p["out2_w"], p["out2_b"],
      inv_sqrt_beta)


# --------------------------------------------------------------------------------------
# SSSD forward (glue in plain JAX, hot path in Pallas)
# --------------------------------------------------------------------------------------

def beta_schedule(t, T=1000, beta_start=1e-4, beta_end=0.02):
    # TODO(synk): nscheduler is external; synthetic linear beta schedule substituted.
    frac = jnp.clip(t.astype(jnp.float32) / (T - 1.0), 0.0, 1.0)
    return beta_start + (beta_end - beta_start) * frac


def diffusion_projection_all_layers(emb, p):
    """Hoisted diffusion projection: d[b, k] = emb[b] @ wd[k] + bd[k] -> (B*depth, 1, C)."""
    demb = jnp.einsum("be,kec->bkc", emb.astype(jnp.bfloat16), p["wd"],
                      preferred_element_type=jnp.float32)
    demb = demb + p["bd"][:, 0, :][None]                  # (B, depth, C)
    B, depth, C = demb.shape
    return demb.reshape(B * depth, 1, C)


def sssd_forward(x_ncl, t, params):
    emb = diffusion_embedding(t, params)                          # (B, E)
    demb = diffusion_projection_all_layers(emb, params)           # (B*depth, 1, C)

    beta = beta_schedule(t)                                       # (B,)
    inv_sqrt_beta = (1.0 / jnp.sqrt(beta)).astype(jnp.float32)    # (B,) -> SMEM scalars

    # Output comes out of the kernel already in NCL (lane-dense store, no transpose needed).
    return residual_stack(x_ncl.astype(jnp.float32), demb, inv_sqrt_beta, params)


# --------------------------------------------------------------------------------------
# Deterministic parameter init. Matmul weights stored pre-transposed and in bfloat16 for
# the MXU; biases / LayerNorm params / embedding stay float32.  Per-layer params are
# stacked along a leading depth axis for the fused kernel.
# --------------------------------------------------------------------------------------

def init_params(key, in_chn, num_tokens, embedding_dim, depth):
    C, E = num_tokens, embedding_dim
    counter = [0]

    def nk():
        counter[0] += 1
        return jax.random.fold_in(key, counter[0])

    def nrm(shape, scale=0.1, dtype=jnp.float32):
        return (jax.random.normal(nk(), shape, jnp.float32) * scale).astype(dtype)

    bf = jnp.bfloat16
    p = {
        "gfp_w": jax.random.normal(nk(), (1, E // 2), jnp.float32) * 30.0,
        "emb_w1": nrm((E, E)), "emb_b1": nrm((1, E)),
        "emb_w2": nrm((E, E)), "emb_b2": nrm((1, E)),
        "in_proj_w": nrm((in_chn, C), dtype=bf), "in_proj_b": nrm((1, C)),
        "out1_w": nrm((C, C), dtype=bf), "out1_b": nrm((1, C)),
        # output_projection2 stored as (out=in_chn, in=C) so the head produces (in_chn, L)
        "out2_w": nrm((in_chn, C), dtype=bf), "out2_b": nrm((in_chn, 1)),
        # stacked per-layer parameters: (depth, ...)
        "wd": nrm((depth, E, C), dtype=bf), "bd": nrm((depth, 1, C)),
        "win": nrm((depth, C, 2 * C), dtype=bf), "bin": nrm((depth, 1, 2 * C)),
        "wout": nrm((depth, C, 2 * C), dtype=bf), "bout": nrm((depth, 1, 2 * C)),
        "g1": jnp.ones((depth, 1, 2 * C), jnp.float32),
        "be1": jnp.zeros((depth, 1, 2 * C), jnp.float32),
        "g2": jnp.ones((depth, 1, 2 * C), jnp.float32),
        "be2": jnp.zeros((depth, 1, 2 * C), jnp.float32),
    }
    return p


# --------------------------------------------------------------------------------------

if __name__ == "__main__":
    B, in_chn, L = 2, 4, 16
    # lane-dense hidden sizes (multiple of 128) so channel dims fill TPU lanes / MXU
    num_tokens, embedding_dim, depth = 128, 128, 2

    key = jax.random.PRNGKey(0)
    k_p, k_x, k_t = jax.random.split(key, 3)

    params = init_params(k_p, in_chn, num_tokens, embedding_dim, depth)
    x = jax.random.normal(k_x, (B, in_chn, L), jnp.float32)        # NCL, like PyTorch
    t = jnp.array([3.0, 17.0], dtype=jnp.float32)                  # diffusion timesteps (B,)

    out = jax.jit(sssd_forward)(x, t, params)
    jax.block_until_ready(out)
    assert out.shape == (B, in_chn, L)
    print("KERNEL_OK")
</pallas_src>

<mosaic_0001>
module attributes {stable_mosaic.version = 11 : i64} {
  func.func @_diffusion_embedding_kernel(%arg0: i32, %arg1: memref<2x1xf32, #tpu.memory_space<vmem>>, %arg2: memref<1x64xf32, #tpu.memory_space<vmem>>, %arg3: memref<128x128xf32, #tpu.memory_space<vmem>>, %arg4: memref<1x128xf32, #tpu.memory_space<vmem>>, %arg5: memref<128x128xf32, #tpu.memory_space<vmem>>, %arg6: memref<1x128xf32, #tpu.memory_space<vmem>>, %arg7: memref<2x128xf32, #tpu.memory_space<vmem>>) attributes {dimension_semantics = [#tpu.dimension_semantics<arbitrary>], iteration_bounds = array<i64: 1>, scalar_prefetch = 0 : i64, scratch_operands = 0 : i64, tpu.core_type = #tpu.core_type<tc>, window_params = [{pipeline_mode = #tpu.pipeline_mode<synchronous>, transform_indices = @transform_0, window_bounds = array<i64: 2, 1>}, {pipeline_mode = #tpu.pipeline_mode<synchronous>, transform_indices = @transform_1, window_bounds = array<i64: 1, 64>}, {pipeline_mode = #tpu.pipeline_mode<synchronous>, transform_indices = @transform_2, window_bounds = array<i64: 128, 128>}, {pipeline_mode = #tpu.pipeline_mode<synchronous>, transform_indices = @transform_3, window_bounds = array<i64: 1, 128>}, {pipeline_mode = #tpu.pipeline_mode<synchronous>, transform_indices = @transform_4, window_bounds = array<i64: 128, 128>}, {pipeline_mode = #tpu.pipeline_mode<synchronous>, transform_indices = @transform_5, window_bounds = array<i64: 1, 128>}, {pipeline_mode = #tpu.pipeline_mode<synchronous>, transform_indices = @transform_6, window_bounds = array<i64: 2, 128>}]} {
    %c0 = arith.constant 0 : index
    %c0_0 = arith.constant 0 : index
    %0 = vector.load %arg1[%c0, %c0_0] : memref<2x1xf32, #tpu.memory_space<vmem>>, vector<2x1xf32>
    %c0_1 = arith.constant 0 : index
    %c0_2 = arith.constant 0 : index
    %1 = vector.load %arg2[%c0_1, %c0_2] : memref<1x64xf32, #tpu.memory_space<vmem>>, vector<1x64xf32>
    %2 = vector.broadcast %0 : vector<2x1xf32> to vector<2x64xf32>
    %3 = vector.broadcast %1 : vector<1x64xf32> to vector<2x64xf32>
    %4 = arith.mulf %2, %3 : vector<2x64xf32>
    %cst = arith.constant 6.28318548 : f32
    %5 = vector.broadcast %cst : f32 to vector<2x64xf32>
    %6 = arith.mulf %4, %5 : vector<2x64xf32>
    %7 = math.sin %6 : vector<2x64xf32>
    %8 = math.cos %6 : vector<2x64xf32>
    %c0_3 = arith.constant 0 : index
    %c0_4 = arith.constant 0 : index
    %9 = vector.load %arg3[%c0_3, %c0_4] : memref<128x128xf32, #tpu.memory_space<vmem>>, vector<64x128xf32>
    %cst_5 = arith.constant dense<0.000000e+00> : vector<2x128xf32>
    %10 = tpu.matmul %7, %9, %cst_5 {dimension_numbers = #tpu.dot_dimension_numbers<[1], [0], [0], [1], [0, 0, 1, 1], [], []>} : vector<2x64xf32>, vector<64x128xf32>, vector<2x128xf32> -> vector<2x128xf32>
    %c64 = arith.constant 64 : index
    %c0_6 = arith.constant 0 : index
    %11 = vector.load %arg3[%c64, %c0_6] : memref<128x128xf32, #tpu.memory_space<vmem>>, vector<64x128xf32>
    %cst_7 = arith.constant dense<0.000000e+00> : vector<2x128xf32>
    %12 = tpu.matmul %8, %11, %cst_7 {dimension_numbers = #tpu.dot_dimension_numbers<[1], [0], [0], [1], [0, 0, 1, 1], [], []>} : vector<2x64xf32>, vector<64x128xf32>, vector<2x128xf32> -> vector<2x128xf32>
    %13 = arith.addf %10, %12 : vector<2x128xf32>
    %c0_8 = arith.constant 0 : index
    %c0_9 = arith.constant 0 : index
    %14 = vector.load %arg4[%c0_8, %c0_9] : memref<1x128xf32, #tpu.memory_space<vmem>>, vector<1x128xf32>
    %15 = vector.broadcast %14 : vector<1x128xf32> to vector<2x128xf32>
    %16 = arith.addf %13, %15 : vector<2x128xf32>
    %17 = arith.negf %16 : vector<2x128xf32>
    %18 = math.exp %17 : vector<2x128xf32>
    %cst_10 = arith.constant 1.000000e+00 : f32
    %19 = vector.broadcast %cst_10 : f32 to vector<2x128xf32>
    %20 = arith.addf %19, %18 : vector<2x128xf32>
    %21 = arith.divf %19, %20 : vector<2x128xf32>
    %22 = arith.mulf %16, %21 : vector<2x128xf32>
    %c0_11 = arith.constant 0 : index
    %c0_12 = arith.constant 0 : index
    %23 = vector.load %arg5[%c0_11, %c0_12] : memref<128x128xf32, #tpu.memory_space<vmem>>, vector<128x128xf32>
    %cst_13 = arith.constant dense<0.000000e+00> : vector<2x128xf32>
    %24 = tpu.matmul %22, %23, %cst_13 {dimension_numbers = #tpu.dot_dimension_numbers<[1], [0], [0], [1], [0, 0, 1, 1], [], []>} : vector<2x128xf32>, vector<128x128xf32>, vector<2x128xf32> -> vector<2x128xf32>
    %c0_14 = arith.constant 0 : index
    %c0_15 = arith.constant 0 : index
    %25 = vector.load %arg6[%c0_14, %c0_15] : memref<1x128xf32, #tpu.memory_space<vmem>>, vector<1x128xf32>
    %26 = vector.broadcast %25 : vector<1x128xf32> to vector<2x128xf32>
    %27 = arith.addf %24, %26 : vector<2x128xf32>
    %28 = arith.negf %27 : vector<2x128xf32>
    %29 = math.exp %28 : vector<2x128xf32>
    %cst_16 = arith.constant 1.000000e+00 : f32
    %30 = vector.broadcast %cst_16 : f32 to vector<2x128xf32>
    %31 = arith.addf %30, %29 : vector<2x128xf32>
    %32 = arith.divf %30, %31 : vector<2x128xf32>
    %33 = arith.mulf %27, %32 : vector<2x128xf32>
    %c0_17 = arith.constant 0 : index
    %c0_18 = arith.constant 0 : index
    %34 = vector.load %arg7[%c0_17, %c0_18] : memref<2x128xf32, #tpu.memory_space<vmem>>, vector<2x128xf32>
    tpu.vector_store %arg7[%c0_17, %c0_18], %33 {strides = array<i32>} : memref<2x128xf32, #tpu.memory_space<vmem>>, vector<2x128xf32>,
    return
  }
  func.func @transform_0(%arg0: i32) -> (i32, i32) {
    %c0_i32 = arith.constant 0 : i32
    %c0_i32_0 = arith.constant 0 : i32
    %c0_i32_1 = arith.constant 0 : i32
    return %c0_i32, %c0_i32_0 : i32, i32
  }
  func.func @transform_1(%arg0: i32) -> (i32, i32) {
    %c0_i32 = arith.constant 0 : i32
    %c0_i32_0 = arith.constant 0 : i32
    %c0_i32_1 = arith.constant 0 : i32
    return %c0_i32, %c0_i32_0 : i32, i32
  }
  func.func @transform_2(%arg0: i32) -> (i32, i32) {
    %c0_i32 = arith.constant 0 : i32
    %c0_i32_0 = arith.constant 0 : i32
    %c0_i32_1 = arith.constant 0 : i32
    return %c0_i32, %c0_i32_0 : i32, i32
  }
  func.func @transform_3(%arg0: i32) -> (i32, i32) {
    %c0_i32 = arith.constant 0 : i32
    %c0_i32_0 = arith.constant 0 : i32
    %c0_i32_1 = arith.constant 0 : i32
    return %c0_i32, %c0_i32_0 : i32, i32
  }
  func.func @transform_4(%arg0: i32) -> (i32, i32) {
    %c0_i32 = arith.constant 0 : i32
    %c0_i32_0 = arith.constant 0 : i32
    %c0_i32_1 = arith.constant 0 : i32
    return %c0_i32, %c0_i32_0 : i32, i32
  }
  func.func @transform_5(%arg0: i32) -> (i32, i32) {
    %c0_i32 = arith.constant 0 : i32
    %c0_i32_0 = arith.constant 0 : i32
    %c0_i32_1 = arith.constant 0 : i32
    return %c0_i32, %c0_i32_0 : i32, i32
  }
  func.func @transform_6(%arg0: i32) -> (i32, i32) {
    %c0_i32 = arith.constant 0 : i32
    %c0_i32_0 = arith.constant 0 : i32
    %c0_i32_1 = arith.constant 0 : i32
    return %c0_i32, %c0_i32_0 : i32, i32
  }
}

module attributes {stable_mosaic.version = 11 : i64} {
  func.func @_stack_kernel(%arg0: i32, %arg1: i32, %arg2: i32, %arg3: memref<1x4x16xf32, #tpu.memory_space<vmem>>, %arg4: memref<4x1x128xf32, #tpu.memory_space<vmem>>, %arg5: memref<4x128xbf16, #tpu.memory_space<vmem>>, %arg6: memref<1x128xf32, #tpu.memory_space<vmem>>, %arg7: memref<2x128x256xbf16, #tpu.memory_space<vmem>>, %arg8: memref<2x1x256xf32, #tpu.memory_space<vmem>>, %arg9: memref<2x1x256xf32, #tpu.memory_space<vmem>>, %arg10: memref<2x1x256xf32, #tpu.memory_space<vmem>>, %arg11: memref<2x1x256xf32, #tpu.memory_space<vmem>>, %arg12: memref<2x1x256xf32, #tpu.memory_space<vmem>>, %arg13: memref<2x128x256xbf16, #tpu.memory_space<vmem>>, %arg14: memref<2x1x256xf32, #tpu.memory_space<vmem>>, %arg15: memref<128x128xbf16, #tpu.memory_space<vmem>>, %arg16: memref<1x128xf32, #tpu.memory_space<vmem>>, %arg17: memref<4x128xbf16, #tpu.memory_space<vmem>>, %arg18: memref<4x1xf32, #tpu.memory_space<vmem>>, %arg19: memref<2xf32, #tpu.memory_space<smem>>, %arg20: memref<1x4x16xf32, #tpu.memory_space<vmem>>, %arg21: memref<16x128xf32, #tpu.memory_space<vmem>>, %arg22: memref<16x128xf32, #tpu.memory_space<vmem>>) attributes {dimension_semantics = [#tpu.dimension_semantics<parallel>, #tpu.dimension_semantics<parallel>, #tpu.dimension_semantics<arbitrary>], iteration_bounds = array<i64: 2, 1, 2>, scalar_prefetch = 0 : i64, scratch_operands = 2 : i64, tpu.core_type = #tpu.core_type<tc>, window_params = [{transform_indices = @transform_0, window_bounds = array<i64: 1, 4, 16>}, {pipeline_mode = #tpu.pipeline_mode<synchronous>, transform_indices = @transform_1, window_bounds = array<i64: 4, 1, 128>}, {pipeline_mode = #tpu.pipeline_mode<synchronous>, transform_indices = @transform_2, window_bounds = array<i64: 4, 128>}, {pipeline_mode = #tpu.pipeline_mode<synchronous>, transform_indices = @transform_3, window_bounds = array<i64: 1, 128>}, {pipeline_mode = #tpu.pipeline_mode<synchronous>, transform_indices = @transform_4, window_bounds = array<i64: 2, 128, 256>}, {pipeline_mode = #tpu.pipeline_mode<synchronous>, transform_indices = @transform_5, window_bounds = array<i64: 2, 1, 256>}, {pipeline_mode = #tpu.pipeline_mode<synchronous>, transform_indices = @transform_6, window_bounds = array<i64: 2, 1, 256>}, {pipeline_mode = #tpu.pipeline_mode<synchronous>, transform_indices = @transform_7, window_bounds = array<i64: 2, 1, 256>}, {pipeline_mode = #tpu.pipeline_mode<synchronous>, transform_indices = @transform_8, window_bounds = array<i64: 2, 1, 256>}, {pipeline_mode = #tpu.pipeline_mode<synchronous>, transform_indices = @transform_9, window_bounds = array<i64: 2, 1, 256>}, {pipeline_mode = #tpu.pipeline_mode<synchronous>, transform_indices = @transform_10, window_bounds = array<i64: 2, 128, 256>}, {pipeline_mode = #tpu.pipeline_mode<synchronous>, transform_indices = @transform_11, window_bounds = array<i64: 2, 1, 256>}, {pipeline_mode = #tpu.pipeline_mode<synchronous>, transform_indices = @transform_12, window_bounds = array<i64: 128, 128>}, {pipeline_mode = #tpu.pipeline_mode<synchronous>, transform_indices = @transform_13, window_bounds = array<i64: 1, 128>}, {pipeline_mode = #tpu.pipeline_mode<synchronous>, transform_indices = @transform_14, window_bounds = array<i64: 4, 128>}, {pipeline_mode = #tpu.pipeline_mode<synchronous>, transform_indices = @transform_15, window_bounds = array<i64: 4, 1>}, {transform_indices = @transform_16, window_bounds = array<i64: 2>}, {transform_indices = @transform_17, window_bounds = array<i64: 1, 4, 16>}]} {
    %c0_i32 = arith.constant 0 : i32
    %0 = arith.cmpi eq, %arg2, %c0_i32 : i32
    %1 = arith.extui %0 : i1 to i32
    %c0_i32_0 = arith.constant 0 : i32
    %2 = arith.cmpi ne, %1, %c0_i32_0 : i32
    scf.if %2 {
      %c0_40 = arith.constant 0 : index
      %c0_41 = arith.constant 0 : index
      %c0_42 = arith.constant 0 : index
      %104 = vector.load %arg3[%c0_40, %c0_41, %c0_42] : memref<1x4x16xf32, #tpu.memory_space<vmem>>, vector<1x4x16xf32>
      %105 = vector.shape_cast %104 : vector<1x4x16xf32> to vector<4x16xf32>
      %106 = arith.truncf %105 : vector<4x16xf32> to vector<4x16xbf16>
      %c0_43 = arith.constant 0 : index
      %c0_44 = arith.constant 0 : index
      %107 = vector.load %arg5[%c0_43, %c0_44] : memref<4x128xbf16, #tpu.memory_space<vmem>>, vector<4x128xbf16>
      %cst_45 = arith.constant dense<0.000000e+00> : vector<16x128xf32>
      %108 = tpu.matmul %106, %107, %cst_45 {dimension_numbers = #tpu.dot_dimension_numbers<[0], [0], [1], [1], [0, 1, 1, 1], [], []>} : vector<4x16xbf16>, vector<4x128xbf16>, vector<16x128xf32> -> vector<16x128xf32>
      %c0_46 = arith.constant 0 : index
      %c0_47 = arith.constant 0 : index
      %109 = vector.load %arg6[%c0_46, %c0_47] : memref<1x128xf32, #tpu.memory_space<vmem>>, vector<1x128xf32>
      %110 = vector.broadcast %109 : vector<1x128xf32> to vector<16x128xf32>
      %111 = arith.addf %108, %110 : vector<16x128xf32>
      %c0_48 = arith.constant 0 : index
      %c0_49 = arith.constant 0 : index
      %112 = vector.load %arg21[%c0_48, %c0_49] : memref<16x128xf32, #tpu.memory_space<vmem>>, vector<16x128xf32>
      tpu.vector_store %arg21[%c0_48, %c0_49], %111 {strides = array<i32>} : memref<16x128xf32, #tpu.memory_space<vmem>>, vector<16x128xf32>,
      %cst_50 = arith.constant 0.000000e+00 : f32
      %113 = vector.broadcast %cst_50 : f32 to vector<16x128xf32>
      %c0_51 = arith.constant 0 : index
      %c0_52 = arith.constant 0 : index
      %114 = vector.load %arg22[%c0_51, %c0_52] : memref<16x128xf32, #tpu.memory_space<vmem>>, vector<16x128xf32>
      tpu.vector_store %arg22[%c0_51, %c0_52], %113 {strides = array<i32>} : memref<16x128xf32, #tpu.memory_space<vmem>>, vector<16x128xf32>,
    } else {
    }
    %c0 = arith.constant 0 : index
    %c0_1 = arith.constant 0 : index
    %3 = vector.load %arg21[%c0, %c0_1] : memref<16x128xf32, #tpu.memory_space<vmem>>, vector<16x128xf32>
    %c2_i32 = arith.constant 2 : i32
    %4 = arith.muli %arg0, %c2_i32 : i32
    %5 = arith.addi %4, %arg2 : i32
    %6 = arith.index_cast %5 : i32 to index
    %c0_2 = arith.constant 0 : index
    %c0_3 = arith.constant 0 : index
    %7 = vector.load %arg4[%6, %c0_2, %c0_3] : memref<4x1x128xf32, #tpu.memory_space<vmem>>, vector<1x1x128xf32>
    %8 = vector.shape_cast %7 : vector<1x1x128xf32> to vector<1x128xf32>
    %9 = vector.broadcast %8 : vector<1x128xf32> to vector<16x128xf32>
    %10 = arith.addf %3, %9 : vector<16x128xf32>
    %11 = arith.truncf %10 : vector<16x128xf32> to vector<16x128xbf16>
    %12 = arith.index_cast %arg2 : i32 to index
    %c0_4 = arith.constant 0 : index
    %c0_5 = arith.constant 0 : index
    %13 = vector.load %arg7[%12, %c0_4, %c0_5] : memref<2x128x256xbf16, #tpu.memory_space<vmem>>, vector<1x128x256xbf16>
    %14 = vector.shape_cast %13 : vector<1x128x256xbf16> to vector<128x256xbf16>
    %cst = arith.constant dense<0.000000e+00> : vector<16x256xf32>
    %15 = tpu.matmul %11, %14, %cst {dimension_numbers = #tpu.dot_dimension_numbers<[1], [0], [0], [1], [0, 0, 1, 1], [], []>} : vector<16x128xbf16>, vector<128x256xbf16>, vector<16x256xf32> -> vector<16x256xf32>
    %16 = arith.index_cast %arg2 : i32 to index
    %c0_6 = arith.constant 0 : index
    %c0_7 = arith.constant 0 : index
    %17 = vector.load %arg8[%16, %c0_6, %c0_7] : memref<2x1x256xf32, #tpu.memory_space<vmem>>, vector<1x1x256xf32>
    %18 = vector.shape_cast %17 : vector<1x1x256xf32> to vector<1x256xf32>
    %19 = vector.broadcast %18 : vector<1x256xf32> to vector<16x256xf32>
    %20 = arith.addf %15, %19 : vector<16x256xf32>
    %21 = arith.index_cast %arg2 : i32 to index
    %c0_8 = arith.constant 0 : index
    %c0_9 = arith.constant 0 : index
    %22 = vector.load %arg9[%21, %c0_8, %c0_9] : memref<2x1x256xf32, #tpu.memory_space<vmem>>, vector<1x1x256xf32>
    %23 = vector.shape_cast %22 : vector<1x1x256xf32> to vector<1x256xf32>
    %24 = arith.index_cast %arg2 : i32 to index
    %c0_10 = arith.constant 0 : index
    %c0_11 = arith.constant 0 : index
    %25 = vector.load %arg10[%24, %c0_10, %c0_11] : memref<2x1x256xf32, #tpu.memory_space<vmem>>, vector<1x1x256xf32>
    %26 = vector.shape_cast %25 : vector<1x1x256xf32> to vector<1x256xf32>
    %cst_12 = arith.constant dense<0.000000e+00> : vector<16xf32>
    %27 = vector.multi_reduction <add>, %20, %cst_12 [1] : vector<16x256xf32> to vector<16xf32>
    %28 = vector.shape_cast %27 : vector<16xf32> to vector<16x1xf32>
    %cst_13 = arith.constant 2.560000e+02 : f32
    %29 = vector.broadcast %cst_13 : f32 to vector<16x1xf32>
    %30 = arith.divf %28, %29 : vector<16x1xf32>
    %31 = vector.broadcast %30 : vector<16x1xf32> to vector<16x256xf32>
    %32 = arith.subf %20, %31 : vector<16x256xf32>
    %33 = arith.mulf %32, %32 : vector<16x256xf32>
    %cst_14 = arith.constant dense<0.000000e+00> : vector<16xf32>
    %34 = vector.multi_reduction <add>, %33, %cst_14 [1] : vector<16x256xf32> to vector<16xf32>
    %35 = vector.shape_cast %34 : vector<16xf32> to vector<16x1xf32>
    %cst_15 = arith.constant 2.560000e+02 : f32
    %36 = vector.broadcast %cst_15 : f32 to vector<16x1xf32>
    %37 = arith.divf %35, %36 : vector<16x1xf32>
    %cst_16 = arith.constant 9.99999974E-6 : f32
    %38 = vector.broadcast %cst_16 : f32 to vector<16x1xf32>
    %39 = arith.addf %37, %38 : vector<16x1xf32>
    %40 = math.rsqrt %39 : vector<16x1xf32>
    %41 = vector.broadcast %40 : vector<16x1xf32> to vector<16x256xf32>
    %42 = arith.mulf %32, %41 : vector<16x256xf32>
    %43 = vector.broadcast %23 : vector<1x256xf32> to vector<16x256xf32>
    %44 = arith.mulf %42, %43 : vector<16x256xf32>
    %45 = vector.broadcast %26 : vector<1x256xf32> to vector<16x256xf32>
    %46 = arith.addf %44, %45 : vector<16x256xf32>
    %47 = arith.index_cast %arg2 : i32 to index
    %c0_17 = arith.constant 0 : index
    %c0_18 = arith.constant 0 : index
    %48 = vector.load %arg11[%47, %c0_17, %c0_18] : memref<2x1x256xf32, #tpu.memory_space<vmem>>, vector<1x1x256xf32>
    %49 = vector.shape_cast %48 : vector<1x1x256xf32> to vector<1x256xf32>
    %50 = arith.index_cast %arg2 : i32 to index
    %c0_19 = arith.constant 0 : index
    %c0_20 = arith.constant 0 : index
    %51 = vector.load %arg12[%50, %c0_19, %c0_20] : memref<2x1x256xf32, #tpu.memory_space<vmem>>, vector<1x1x256xf32>
    %52 = vector.shape_cast %51 : vector<1x1x256xf32> to vector<1x256xf32>
    %cst_21 = arith.constant dense<0.000000e+00> : vector<16xf32>
    %53 = vector.multi_reduction <add>, %46, %cst_21 [1] : vector<16x256xf32> to vector<16xf32>
    %54 = vector.shape_cast %53 : vector<16xf32> to vector<16x1xf32>
    %cst_22 = arith.constant 2.560000e+02 : f32
    %55 = vector.broadcast %cst_22 : f32 to vector<16x1xf32>
    %56 = arith.divf %54, %55 : vector<16x1xf32>
    %57 = vector.broadcast %56 : vector<16x1xf32> to vector<16x256xf32>
    %58 = arith.subf %46, %57 : vector<16x256xf32>
    %59 = arith.mulf %58, %58 : vector<16x256xf32>
    %cst_23 = arith.constant dense<0.000000e+00> : vector<16xf32>
    %60 = vector.multi_reduction <add>, %59, %cst_23 [1] : vector<16x256xf32> to vector<16xf32>
    %61 = vector.shape_cast %60 : vector<16xf32> to vector<16x1xf32>
    %cst_24 = arith.constant 2.560000e+02 : f32
    %62 = vector.broadcast %cst_24 : f32 to vector<16x1xf32>
    %63 = arith.divf %61, %62 : vector<16x1xf32>
    %cst_25 = arith.constant 9.99999974E-6 : f32
    %64 = vector.broadcast %cst_25 : f32 to vector<16x1xf32>
    %65 = arith.addf %63, %64 : vector<16x1xf32>
    %66 = math.rsqrt %65 : vector<16x1xf32>
    %67 = vector.broadcast %66 : vector<16x1xf32> to vector<16x256xf32>
    %68 = arith.mulf %58, %67 : vector<16x256xf32>
    %69 = vector.broadcast %49 : vector<1x256xf32> to vector<16x256xf32>
    %70 = arith.mulf %68, %69 : vector<16x256xf32>
    %71 = vector.broadcast %52 : vector<1x256xf32> to vector<16x256xf32>
    %72 = arith.addf %70, %71 : vector<16x256xf32>
    %73 = vector.extract_strided_slice %72 {offsets = [0, 0], sizes = [16, 128], strides = [1, 1]} : vector<16x256xf32> to vector<16x128xf32>
    %74 = vector.extract_strided_slice %72 {offsets = [0, 128], sizes = [16, 128], strides = [1, 1]} : vector<16x256xf32> to vector<16x128xf32>
    %75 = arith.negf %73 : vector<16x128xf32>
    %76 = math.exp %75 : vector<16x128xf32>
    %cst_26 = arith.constant 1.000000e+00 : f32
    %77 = vector.broadcast %cst_26 : f32 to vector<16x128xf32>
    %78 = arith.addf %77, %76 : vector<16x128xf32>
    %79 = arith.divf %77, %78 : vector<16x128xf32>
    %80 = math.tanh %74 : vector<16x128xf32>
    %81 = arith.mulf %79, %80 : vector<16x128xf32>
    %82 = arith.truncf %81 : vector<16x128xf32> to vector<16x128xbf16>
    %83 = arith.index_cast %arg2 : i32 to index
    %c0_27 = arith.constant 0 : index
    %c0_28 = arith.constant 0 : index
    %84 = vector.load %arg13[%83, %c0_27, %c0_28] : memref<2x128x256xbf16, #tpu.memory_space<vmem>>, vector<1x128x256xbf16>
    %85 = vector.shape_cast %84 : vector<1x128x256xbf16> to vector<128x256xbf16>
    %cst_29 = arith.constant dense<0.000000e+00> : vector<16x256xf32>
    %86 = tpu.matmul %82, %85, %cst_29 {dimension_numbers = #tpu.dot_dimension_numbers<[1], [0], [0], [1], [0, 0, 1, 1], [], []>} : vector<16x128xbf16>, vector<128x256xbf16>, vector<16x256xf32> -> vector<16x256xf32>
    %87 = arith.index_cast %arg2 : i32 to index
    %c0_30 = arith.constant 0 : index
    %c0_31 = arith.constant 0 : index
    %88 = vector.load %arg14[%87, %c0_30, %c0_31] : memref<2x1x256xf32, #tpu.memory_space<vmem>>, vector<1x1x256xf32>
    %89 = vector.shape_cast %88 : vector<1x1x256xf32> to vector<1x256xf32>
    %90 = vector.broadcast %89 : vector<1x256xf32> to vector<16x256xf32>
    %91 = arith.addf %86, %90 : vector<16x256xf32>
    %92 = vector.extract_strided_slice %91 {offsets = [0, 0], sizes = [16, 128], strides = [1, 1]} : vector<16x256xf32> to vector<16x128xf32>
    %93 = vector.extract_strided_slice %91 {offsets = [0, 128], sizes = [16, 128], strides = [1, 1]} : vector<16x256xf32> to vector<16x128xf32>
    %94 = arith.addf %3, %92 : vector<16x128xf32>
    %cst_32 = arith.constant 0.707106769 : f32
    %95 = vector.broadcast %cst_32 : f32 to vector<16x128xf32>
    %96 = arith.mulf %94, %95 : vector<16x128xf32>
    %c0_33 = arith.constant 0 : index
    %c0_34 = arith.constant 0 : index
    %97 = vector.load %arg21[%c0_33, %c0_34] : memref<16x128xf32, #tpu.memory_space<vmem>>, vector<16x128xf32>
    tpu.vector_store %arg21[%c0_33, %c0_34], %96 {strides = array<i32>} : memref<16x128xf32, #tpu.memory_space<vmem>>, vector<16x128xf32>,
    %c0_35 = arith.constant 0 : index
    %c0_36 = arith.constant 0 : index
    %98 = vector.load %arg22[%c0_35, %c0_36] : memref<16x128xf32, #tpu.memory_space<vmem>>, vector<16x128xf32>
    %99 = arith.addf %98, %93 : vector<16x128xf32>
    %c0_37 = arith.constant 0 : index
    %c0_38 = arith.constant 0 : index
    %100 = vector.load %arg22[%c0_37, %c0_38] : memref<16x128xf32, #tpu.memory_space<vmem>>, vector<16x128xf32>
    tpu.vector_store %arg22[%c0_37, %c0_38], %99 {strides = array<i32>} : memref<16x128xf32, #tpu.memory_space<vmem>>, vector<16x128xf32>,
    %c1_i32 = arith.constant 1 : i32
    %101 = arith.cmpi eq, %arg2, %c1_i32 : i32
    %102 = arith.extui %101 : i1 to i32
    %c0_i32_39 = arith.constant 0 : i32
    %103 = arith.cmpi ne, %102, %c0_i32_39 : i32
    scf.if %103 {
      %c0_40 = arith.constant 0 : index
      %c0_41 = arith.constant 0 : index
      %104 = vector.load %arg22[%c0_40, %c0_41] : memref<16x128xf32, #tpu.memory_space<vmem>>, vector<16x128xf32>
      %cst_42 = arith.constant 0.707106769 : f32
      %105 = vector.broadcast %cst_42 : f32 to vector<16x128xf32>
      %106 = arith.mulf %104, %105 : vector<16x128xf32>
      %107 = arith.truncf %106 : vector<16x128xf32> to vector<16x128xbf16>
      %c0_43 = arith.constant 0 : index
      %c0_44 = arith.constant 0 : index
      %108 = vector.load %arg15[%c0_43, %c0_44] : memref<128x128xbf16, #tpu.memory_space<vmem>>, vector<128x128xbf16>
      %cst_45 = arith.constant dense<0.000000e+00> : vector<16x128xf32>
      %109 = tpu.matmul %107, %108, %cst_45 {dimension_numbers = #tpu.dot_dimension_numbers<[1], [0], [0], [1], [0, 0, 1, 1], [], []>} : vector<16x128xbf16>, vector<128x128xbf16>, vector<16x128xf32> -> vector<16x128xf32>
      %c0_46 = arith.constant 0 : index
      %c0_47 = arith.constant 0 : index
      %110 = vector.load %arg16[%c0_46, %c0_47] : memref<1x128xf32, #tpu.memory_space<vmem>>, vector<1x128xf32>
      %111 = vector.broadcast %110 : vector<1x128xf32> to vector<16x128xf32>
      %112 = arith.addf %109, %111 : vector<16x128xf32>
      %cst_48 = arith.constant 0.000000e+00 : f32
      %113 = vector.broadcast %cst_48 : f32 to vector<16x128xf32>
      %114 = arith.maximumf %112, %113 : vector<16x128xf32>
      %c0_49 = arith.constant 0 : index
      %c0_50 = arith.constant 0 : index
      %115 = vector.load %arg17[%c0_49, %c0_50] : memref<4x128xbf16, #tpu.memory_space<vmem>>, vector<4x128xbf16>
      %116 = arith.truncf %114 : vector<16x128xf32> to vector<16x128xbf16>
      %cst_51 = arith.constant dense<0.000000e+00> : vector<4x16xf32>
      %117 = tpu.matmul %115, %116, %cst_51 {dimension_numbers = #tpu.dot_dimension_numbers<[1], [1], [0], [0], [0, 0, 1, 0], [], []>} : vector<4x128xbf16>, vector<16x128xbf16>, vector<4x16xf32> -> vector<4x16xf32>
      %c0_52 = arith.constant 0 : index
      %c0_53 = arith.constant 0 : index
      %118 = vector.load %arg18[%c0_52, %c0_53] : memref<4x1xf32, #tpu.memory_space<vmem>>, vector<4x1xf32>
      %119 = vector.broadcast %118 : vector<4x1xf32> to vector<4x16xf32>
      %120 = arith.addf %117, %119 : vector<4x16xf32>
      %121 = arith.index_cast %arg0 : i32 to index
      %122 = memref.load %arg19[%121] : memref<2xf32, #tpu.memory_space<smem>>
      %123 = vector.broadcast %122 : f32 to vector<4x16xf32>
      %124 = arith.mulf %120, %123 : vector<4x16xf32>
      %c0_54 = arith.constant 0 : index
      %c0_55 = arith.constant 0 : index
      %c0_56 = arith.constant 0 : index
      %125 = vector.load %arg20[%c0_54, %c0_55, %c0_56] : memref<1x4x16xf32, #tpu.memory_space<vmem>>, vector<1x4x16xf32>
      %126 = vector.shape_cast %125 : vector<1x4x16xf32> to vector<4x16xf32>
      %127 = vector.shape_cast %124 : vector<4x16xf32> to vector<1x4x16xf32>
      tpu.vector_store %arg20[%c0_54, %c0_55, %c0_56], %127 {strides = array<i32>} : memref<1x4x16xf32, #tpu.memory_space<vmem>>, vector<1x4x16xf32>,
    } else {
    }
    return
  }
  func.func @transform_0(%arg0: i32, %arg1: i32, %arg2: i32) -> (i32, i32, i32) {
    %c0_i32 = arith.constant 0 : i32
    %c0_i32_0 = arith.constant 0 : i32
    return %arg0, %c0_i32, %arg1 : i32, i32, i32
  }
  func.func @transform_1(%arg0: i32, %arg1: i32, %arg2: i32) -> (i32, i32, i32) {
    %c0_i32 = arith.constant 0 : i32
    %c0_i32_0 = arith.constant 0 : i32
    %c0_i32_1 = arith.constant 0 : i32
    %c0_i32_2 = arith.constant 0 : i32
    return %c0_i32, %c0_i32_0, %c0_i32_1 : i32, i32, i32
  }
  func.func @transform_2(%arg0: i32, %arg1: i32, %arg2: i32) -> (i32, i32) {
    %c0_i32 = arith.constant 0 : i32
    %c0_i32_0 = arith.constant 0 : i32
    %c0_i32_1 = arith.constant 0 : i32
    return %c0_i32, %c0_i32_0 : i32, i32
  }
  func.func @transform_3(%arg0: i32, %arg1: i32, %arg2: i32) -> (i32, i32) {
    %c0_i32 = arith.constant 0 : i32
    %c0_i32_0 = arith.constant 0 : i32
    %c0_i32_1 = arith.constant 0 : i32
    return %c0_i32, %c0_i32_0 : i32, i32
  }
  func.func @transform_4(%arg0: i32, %arg1: i32, %arg2: i32) -> (i32, i32, i32) {
    %c0_i32 = arith.constant 0 : i32
    %c0_i32_0 = arith.constant 0 : i32
    %c0_i32_1 = arith.constant 0 : i32
    %c0_i32_2 = arith.constant 0 : i32
    return %c0_i32, %c0_i32_0, %c0_i32_1 : i32, i32, i32
  }
  func.func @transform_5(%arg0: i32, %arg1: i32, %arg2: i32) -> (i32, i32, i32) {
    %c0_i32 = arith.constant 0 : i32
    %c0_i32_0 = arith.constant 0 : i32
    %c0_i32_1 = arith.constant 0 : i32
    %c0_i32_2 = arith.constant 0 : i32
    return %c0_i32, %c0_i32_0, %c0_i32_1 : i32, i32, i32
  }
  func.func @transform_6(%arg0: i32, %arg1: i32, %arg2: i32) -> (i32, i32, i32) {
    %c0_i32 = arith.constant 0 : i32
    %c0_i32_0 = arith.constant 0 : i32
    %c0_i32_1 = arith.constant 0 : i32
    %c0_i32_2 = arith.constant 0 : i32
    return %c0_i32, %c0_i32_0, %c0_i32_1 : i32, i32, i32
  }
  func.func @transform_7(%arg0: i32, %arg1: i32, %arg2: i32) -> (i32, i32, i32) {
    %c0_i32 = arith.constant 0 : i32
    %c0_i32_0 = arith.constant 0 : i32
    %c0_i32_1 = arith.constant 0 : i32
    %c0_i32_2 = arith.constant 0 : i32
    return %c0_i32, %c0_i32_0, %c0_i32_1 : i32, i32, i32
  }
  func.func @transform_8(%arg0: i32, %arg1: i32, %arg2: i32) -> (i32, i32, i32) {
    %c0_i32 = arith.constant 0 : i32
    %c0_i32_0 = arith.constant 0 : i32
    %c0_i32_1 = arith.constant 0 : i32
    %c0_i32_2 = arith.constant 0 : i32
    return %c0_i32, %c0_i32_0, %c0_i32_1 : i32, i32, i32
  }
  func.func @transform_9(%arg0: i32, %arg1: i32, %arg2: i32) -> (i32, i32, i32) {
    %c0_i32 = arith.constant 0 : i32
    %c0_i32_0 = arith.constant 0 : i32
    %c0_i32_1 = arith.constant 0 : i32
    %c0_i32_2 = arith.constant 0 : i32
    return %c0_i32, %c0_i32_0, %c0_i32_1 : i32, i32, i32
  }
  func.func @transform_10(%arg0: i32, %arg1: i32, %arg2: i32) -> (i32, i32, i32) {
    %c0_i32 = arith.constant 0 : i32
    %c0_i32_0 = arith.constant 0 : i32
    %c0_i32_1 = arith.constant 0 : i32
    %c0_i32_2 = arith.constant 0 : i32
    return %c0_i32, %c0_i32_0, %c0_i32_1 : i32, i32, i32
  }
  func.func @transform_11(%arg0: i32, %arg1: i32, %arg2: i32) -> (i32, i32, i32) {
    %c0_i32 = arith.constant 0 : i32
    %c0_i32_0 = arith.constant 0 : i32
    %c0_i32_1 = arith.constant 0 : i32
    %c0_i32_2 = arith.constant 0 : i32
    return %c0_i32, %c0_i32_0, %c0_i32_1 : i32, i32, i32
  }
  func.func @transform_12(%arg0: i32, %arg1: i32, %arg2: i32) -> (i32, i32) {
    %c0_i32 = arith.constant 0 : i32
    %c0_i32_0 = arith.constant 0 : i32
    %c0_i32_1 = arith.constant 0 : i32
    return %c0_i32, %c0_i32_0 : i32, i32
  }
  func.func @transform_13(%arg0: i32, %arg1: i32, %arg2: i32) -> (i32, i32) {
    %c0_i32 = arith.constant 0 : i32
    %c0_i32_0 = arith.constant 0 : i32
    %c0_i32_1 = arith.constant 0 : i32
    return %c0_i32, %c0_i32_0 : i32, i32
  }
  func.func @transform_14(%arg0: i32, %arg1: i32, %arg2: i32) -> (i32, i32) {
    %c0_i32 = arith.constant 0 : i32
    %c0_i32_0 = arith.constant 0 : i32
    %c0_i32_1 = arith.constant 0 : i32
    return %c0_i32, %c0_i32_0 : i32, i32
  }
  func.func @transform_15(%arg0: i32, %arg1: i32, %arg2: i32) -> (i32, i32) {
    %c0_i32 = arith.constant 0 : i32
    %c0_i32_0 = arith.constant 0 : i32
    %c0_i32_1 = arith.constant 0 : i32
    return %c0_i32, %c0_i32_0 : i32, i32
  }
  func.func @transform_16(%arg0: i32, %arg1: i32, %arg2: i32) -> i32 {
    %c0_i32 = arith.constant 0 : i32
    %c0_i32_0 = arith.constant 0 : i32
    return %c0_i32 : i32
  }
  func.func @transform_17(%arg0: i32, %arg1: i32, %arg2: i32) -> (i32, i32, i32) {
    %c0_i32 = arith.constant 0 : i32
    %c0_i32_0 = arith.constant 0 : i32
    return %arg0, %c0_i32, %arg1 : i32, i32, i32
  }
}

</mosaic_0001>

<llo_original>
// kernel: sssd_forward.2
$region0: #{sssd_forward.2}
  #allocation0 [shape = 'u32[]', space=smem, size = 0x4, offset = 0x4, fixed_abs, tag = 'smem constant byte address 0x4 - core index']
  #allocation1 [shape = 'u32[144,128]{1,0:T(1,128)}', space=vmem, size = 0x12000, scoped, tag = 'internal scratch']
  %s0 = inlined_call_operand.vmem [shape: f32[2,1], index: 0, kind: input, shape index: {}]
  %s1 = inlined_call_operand.hbm [shape: f32[1,64], index: 1, kind: input, shape index: {}]
  %s2 = inlined_call_operand.hbm [shape: f32[128,128], index: 2, kind: input, shape index: {}]
  %s3 = inlined_call_operand.hbm [shape: f32[1,128], index: 3, kind: input, shape index: {}]
  %s4 = inlined_call_operand.hbm [shape: f32[128,128], index: 4, kind: input, shape index: {}]
  %s5 = inlined_call_operand.hbm [shape: f32[1,128], index: 5, kind: input, shape index: {}]
  %s6 = inlined_call_operand.vmem [shape: f32[2,128], index: 6, kind: output, shape index: {}]
  %s7 = sld [smem:[#allocation0]]
  $region54: #{sssd_forward.2} parent=0
    _
  %s9 = ssub.s32 1, %s7
  %s10 = scalar_select 0, %s9, %s7
  $region1: #{sssd_forward.2} parent=0
    #allocation2 [shape = 'u8[512]{0}', space=vmem, size = 0x400, scoped, tag = 'input window, operand 1, single buffered']
    #allocation3 [shape = 's32[1]{0}', space=sflag, size = 0x4, scoped, tag = 'scoped memory for sssd_forward.2']
    #allocation4 [shape = 'u8[65536]{0}', space=vmem, size = 0x10000, scoped, tag = 'input window, operand 2, single buffered']
    #allocation5 [shape = 's32[1]{0}', space=sflag, size = 0x4, scoped, tag = 'scoped memory for sssd_forward.2']
    #allocation6 [shape = 'u8[512]{0}', space=vmem, size = 0x400, scoped, tag = 'input window, operand 3, single buffered']
    #allocation7 [shape = 'u8[65536]{0}', space=vmem, size = 0x10000, scoped, tag = 'input window, operand 4, single buffered']
    #allocation8 [shape = 's32[1]{0}', space=sflag, size = 0x4, scoped, tag = 'scoped memory for sssd_forward.2']
    #allocation9 [shape = 'u8[512]{0}', space=vmem, size = 0x400, scoped, tag = 'input window, operand 5, single buffered']
    %11 = vsyncpa [#allocation3], 0
    %12 = vsyncpa [#allocation5], 0
    %13 = vsyncpa [#allocation8], 0
    // Predicated region
    $region2: #{sssd_forward.2} parent=1 // pred_check
      _
    $region3: #{sssd_forward.2} parent=1 // pred_check_branch
      %15 = sbr.rel (0) target = $region5
    $region4: #{sssd_forward.2} parent=1 // pred_region
      _
    $region5: #{sssd_forward.2} parent=1 // pred_fallthru
      _
    // Predicated region
    $region6: #{sssd_forward.2} parent=1 // pred_check
      _
    $region7: #{sssd_forward.2} parent=1 // pred_check_branch
      %17 = sbr.rel (0) target = $region9
    $region8: #{sssd_forward.2} parent=1 // pred_region
      %s19 = ssub.s32 16, 16
      %20 = vsyncadd [#allocation3], %s19
      %s22 = sshll.u32 [#allocation2], 4
      %s23 = int_to_ptr.vmem [resolvable:$true] %s22
      %25 = dma.hbm_to_vmem [thread:$0]  %s1, 16, %s23, [#allocation3]
    $region9: #{sssd_forward.2} parent=1 // pred_fallthru
      _
    // Predicated region
    $region10: #{sssd_forward.2} parent=1 // pred_check
      _
    $region11: #{sssd_forward.2} parent=1 // pred_check_branch
      %27 = sbr.rel (0) target = $region13
    $region12: #{sssd_forward.2} parent=1 // pred_region
      %s29 = ssub.s32 2048, 2048
      %30 = vsyncadd [#allocation5], %s29
      %s31 = sshll.u32 [#allocation4], 4
      %s32 = int_to_ptr.vmem [resolvable:$true] %s31
      %37 = dma.hbm_to_vmem [thread:$0]  %s2, 2048, %s32, [#allocation5], 128, 128, 8
    $region13: #{sssd_forward.2} parent=1 // pred_fallthru
      _
    // Predicated region
    $region14: #{sssd_forward.2} parent=1 // pred_check
      _
    $region15: #{sssd_forward.2} parent=1 // pred_check_branch
      %39 = sbr.rel (0) target = $region17
    $region16: #{sssd_forward.2} parent=1 // pred_region
      %s41 = ssub.s32 16, 16
      %42 = vsyncadd [#allocation5], %s41
      %s44 = sshll.u32 [#allocation6], 4
      %s45 = int_to_ptr.vmem [resolvable:$true] %s44
      %47 = dma.hbm_to_vmem [thread:$0]  %s3, 16, %s45, [#allocation5]
    $region17: #{sssd_forward.2} parent=1 // pred_fallthru
      _
    // Predicated region
    $region18: #{sssd_forward.2} parent=1 // pred_check
      _
    $region19: #{sssd_forward.2} parent=1 // pred_check_branch
      %49 = sbr.rel (0) target = $region21
    $region20: #{sssd_forward.2} parent=1 // pred_region
      %s51 = ssub.s32 2048, 2048
      %52 = vsyncadd [#allocation8], %s51
      %s53 = sshll.u32 [#allocation7], 4
      %s54 = int_to_ptr.vmem [resolvable:$true] %s53
      %59 = dma.hbm_to_vmem [thread:$0]  %s4, 2048, %s54, [#allocation8], 128, 128, 8
    $region21: #{sssd_forward.2} parent=1 // pred_fallthru
      _
    // Predicated region
    $region22: #{sssd_forward.2} parent=1 // pred_check
      _
    $region23: #{sssd_forward.2} parent=1 // pred_check_branch
      %61 = sbr.rel (0) target = $region25
    $region24: #{sssd_forward.2} parent=1 // pred_region
      %s63 = ssub.s32 16, 16
      %64 = vsyncadd [#allocation8], %s63
      %s66 = sshll.u32 [#allocation9], 4
      %s67 = int_to_ptr.vmem [resolvable:$true] %s66
      %69 = dma.hbm_to_vmem [thread:$0]  %s5, 16, %s67, [#allocation8]
    $region25: #{sssd_forward.2} parent=1 // pred_fallthru
      _
    // Predicated region
    $region26: #{sssd_forward.2} parent=1 // pred_check
      _
    $region27: #{sssd_forward.2} parent=1 // pred_check_branch
      %71 = sbr.rel (0) target = $region29
    $region28: #{sssd_forward.2} parent=1 // pred_region
      %72 = dma.done [#allocation3], 16
    $region29: #{sssd_forward.2} parent=1 // pred_fallthru
      _
    // Predicated region
    $region30: #{sssd_forward.2} parent=1 // pred_check
      _
    $region31: #{sssd_forward.2} parent=1 // pred_check_branch
      %74 = sbr.rel (0) target = $region33
    $region32: #{sssd_forward.2} parent=1 // pred_region
      %75 = dma.done [#allocation5], 2048
    $region33: #{sssd_forward.2} parent=1 // pred_fallthru
      _
    // Predicated region
    $region34: #{sssd_forward.2} parent=1 // pred_check
      _
    $region35: #{sssd_forward.2} parent=1 // pred_check_branch
      %77 = sbr.rel (0) target = $region37
    $region36: #{sssd_forward.2} parent=1 // pred_region
      %78 = dma.done [#allocation5], 16
    $region37: #{sssd_forward.2} parent=1 // pred_fallthru
      _
    // Predicated region
    $region38: #{sssd_forward.2} parent=1 // pred_check
      _
    $region39: #{sssd_forward.2} parent=1 // pred_check_branch
      %80 = sbr.rel (0) target = $region41
    $region40: #{sssd_forward.2} parent=1 // pred_region
      %81 = dma.done [#allocation8], 2048
    $region41: #{sssd_forward.2} parent=1 // pred_fallthru
      _
    // Predicated region
    $region42: #{sssd_forward.2} parent=1 // pred_check
      _
    $region43: #{sssd_forward.2} parent=1 // pred_check_branch
      %83 = sbr.rel (0) target = $region45
    $region44: #{sssd_forward.2} parent=1 // pred_region
      %84 = dma.done [#allocation8], 16
    $region45: #{sssd_forward.2} parent=1 // pred_fallthru
      _
    %v85 = vld [vmem:[%s0] sm:$0x3]
    %v86 = vld [vmem:[#allocation2] sm:$0x1]
    %88 = vset.pattern.permute.xlu0 0
    %89 = vperm.xlu0 %88, %v85
    %v90 = vpop.permute.xlu0 %89
    %v93 = vlaneseq
    %v94 = vshrl.u32 %v93, 7
    %v95 = vsub.s32 0, %v94
    %v96 = vrot.slane %v86, %v95
    %v98 = vmul.f32 %v90, %v96
    %v99 = vmul.f32 %v98, 6.2831855
    %v100 = vand.u32 2147483647, %v99
    %vm101 = vcmp.le.f32.partialorder %v100, 0.7853982
    %vm102 = vcmp.lt.s32.totalorder %v99, 0
    %v103 = vand.u32 %v99, 2139095040
    %v104 = vshrl.u32 %v103, 23
    %v105 = vsub.s32 %v104, 127
    %v106 = vand.u32 2147483647, %v99
    %v107 = vand.u32 %v106, 8388607
    %v108 = vor.u32 %v107, 8388608
    %v109 = vsub.s32 0, %v108
    %v110 = vadd.s32 %v105, 1
    %vm111 = vcmp.gt.s32.totalorder %v110, 0
    %v112 = vsel %vm111, %v110, 0
    %v113 = vshrl.u32 %v112, 5
    %v114 = vand.u32 %v112, 31
    %v115 = vsub.s32 32, %v114
    %v116 = vshrl.u32 683565275, %v115
    %v117 = vshll.u32 683565275, %v114
    %v118 = vshrl.u32 2475754826, %v115
    %v119 = vor.u32 %v117, %v118
    %v120 = vshll.u32 2475754826, %v114
    %v121 = vshrl.u32 2131351028, %v115
    %v122 = vor.u32 %v120, %v121
    %v123 = vshll.u32 2131351028, %v114
    %v124 = vshrl.u32 2102212464, %v115
    %v125 = vor.u32 %v123, %v124
    %v126 = vshll.u32 2102212464, %v114
    %v127 = vshrl.u32 920167782, %v115
    %v128 = vor.u32 %v126, %v127
    %v129 = vshll.u32 920167782, %v114
    %v130 = vshrl.u32 1326507024, %v115
    %v131 = vor.u32 %v129, %v130
    %vm132 = vcmp.lt.s32.totalorder %v113, 1
    %vm133 = vcmp.lt.s32.totalorder %v113, 2
    %vm134 = vcmp.lt.s32.totalorder %v113, 3
    %vm135 = vcmp.lt.s32.totalorder %v113, 4
    %v136 = vsel %vm132, %v116, %v119
    %v137 = vsel %vm135, %v125, 2102212464
    %v138 = vsel %vm134, %v122, %v137
    %v139 = vsel %vm133, %v136, %v138
    %v140 = vsel %vm132, %v119, %v122
    %v141 = vsel %vm135, %v128, 920167782
    %v142 = vsel %vm134, %v125, %v141
    %v143 = vsel %vm133, %v140, %v142
    %v144 = vsel %vm132, %v122, %v125
    %v145 = vsel %vm135, %v131, 1326507024
    %v146 = vsel %vm134, %v128, %v145
    %v147 = vsel %vm133, %v144, %v146
    %v148 = vshll.u32 %v108, 8
    %v149 = vmul.u32.u64.compose %v148, %v147
    %v150 = vextract.low.u32 %v149
    %v151 = vextract.high.u32 %v149
    %v152 = vmul.u32.u64.compose %v148, %v143
    %v153 = vextract.low.u32 %v152
    %v154 = vextract.high.u32 %v152
    %v155 = vmul.u32 %v148, %v139
    %v156 = vadd.s32 %v151, %v153
    %vm157 = vc.u32 %v151, %v153
    %v158 = vadd.s32 %v154, 1
    %v159 = vsel %vm157, %v158, %v154
    %v160 = vadd.s32 %v155, %v159
    %v161 = vadd.s32 %v160, 536870912
    %v162 = vshrl.u32 %v161, 30
    %v163 = vshll.u32 %v162, 30
    %v164 = vsub.s32 %v160, %v163
    %vm165 = vcmp.lt.s32.totalorder %v164, 0
    %v166 = vsub.s32 0, %v164
    %v167 = vsel %vm165, %v166, %v164
    %v168 = vclz %v167
    %v169 = vsub.s32 %v168, 2
    %vm170 = vcmp.gt.s32.totalorder 0, %v169
    %v171 = vsel %vm170, 0, %v169
    %v172 = vsub.s32 32, %v171
    %v173 = vshll.u32 %v164, %v171
    %v174 = vshrl.u32 %v156, %v172
    %v175 = vor.u32 %v173, %v174
    %v176 = vsub.s32 4294967266, %v171
    %v177 = vadd.s32 %v176, 127
    %v178 = vshll.u32 %v177, 23
    %v179 = vor.u32 4788187, %v178
    %v180 = vand.u32 2147483647, %v179
    %v182 = vcvt.s32.f32 %v175
    %v183 = vmul.f32 %v182, %v180
    %v184 = vxor.u32 %v183, 2147483648
    %v185 = vsel %vm102, %v184, %v183
    %v186 = vsub.s32 4, %v162
    %v187 = vsel %vm102, %v186, %v162
    %v188 = vsel %vm101, %v99, %v185
    %v189 = vsel %vm101, 0, %v187
    %v190 = vcosq.f32.pop %v188
    %v191 = vsinq.f32.pop %v188
    %vm192 = vweird.f32 %v99
    %v193 = vadd.s32 %v189, 3
    %v194 = vand.u32 %v193, 3
    %vm195 = vcmp.lt.s32.totalorder %v194, 2
    %vm196 = vcmp.eq.s32.totalorder %v194, 0
    %v197 = vxor.u32 %v191, 2147483648
    %v198 = vsel %vm196, %v190, %v197
    %vm199 = vcmp.eq.s32.totalorder %v194, 2
    %v200 = vxor.u32 %v190, 2147483648
    %v201 = vsel %vm199, %v200, %v191
    %v202 = vsel %vm195, %v198, %v201
    %v203 = vsel %vm192, nan, %v202
    %v204 = vand.u32 2147483647, %v99
    %vm205 = vcmp.le.f32.partialorder %v204, 0.7853982
    %vm206 = vcmp.lt.s32.totalorder %v99, 0
    %v207 = vand.u32 %v99, 2139095040
    %v208 = vshrl.u32 %v207, 23
    %v209 = vsub.s32 %v208, 127
    %v210 = vand.u32 2147483647, %v99
    %v211 = vand.u32 %v210, 8388607
    %v212 = vor.u32 %v211, 8388608
    %v213 = vsub.s32 0, %v212
    %v214 = vadd.s32 %v209, 1
    %vm215 = vcmp.gt.s32.totalorder %v214, 0
    %v216 = vsel %vm215, %v214, 0
    %v217 = vshrl.u32 %v216, 5
    %v218 = vand.u32 %v216, 31
    %v219 = vsub.s32 32, %v218
    %v220 = vshrl.u32 683565275, %v219
    %v221 = vshll.u32 683565275, %v218
    %v222 = vshrl.u32 2475754826, %v219
    %v223 = vor.u32 %v221, %v222
    %v224 = vshll.u32 2475754826, %v218
    %v225 = vshrl.u32 2131351028, %v219
    %v226 = vor.u32 %v224, %v225
    %v227 = vshll.u32 2131351028, %v218
    %v228 = vshrl.u32 2102212464, %v219
    %v229 = vor.u32 %v227, %v228
    %v230 = vshll.u32 2102212464, %v218
    %v231 = vshrl.u32 920167782, %v219
    %v232 = vor.u32 %v230, %v231
    %v233 = vshll.u32 920167782, %v218
    %v234 = vshrl.u32 1326507024, %v219
    %v235 = vor.u32 %v233, %v234
    %vm236 = vcmp.lt.s32.totalorder %v217, 1
    %vm237 = vcmp.lt.s32.totalorder %v217, 2
    %vm238 = vcmp.lt.s32.totalorder %v217, 3
    %vm239 = vcmp.lt.s32.totalorder %v217, 4
    %v240 = vsel %vm236, %v220, %v223
    %v241 = vsel %vm239, %v229, 2102212464
    %v242 = vsel %vm238, %v226, %v241
    %v243 = vsel %vm237, %v240, %v242
    %v244 = vsel %vm236, %v223, %v226
    %v245 = vsel %vm239, %v232, 920167782
    %v246 = vsel %vm238, %v229, %v245
    %v247 = vsel %vm237, %v244, %v246
    %v248 = vsel %vm236, %v226, %v229
    %v249 = vsel %vm239, %v235, 1326507024
    %v250 = vsel %vm238, %v232, %v249
    %v251 = vsel %vm237, %v248, %v250
    %v252 = vshll.u32 %v212, 8
    %v253 = vmul.u32.u64.compose %v252, %v251
    %v254 = vextract.low.u32 %v253
    %v255 = vextract.high.u32 %v253
    %v256 = vmul.u32.u64.compose %v252, %v247
    %v257 = vextract.low.u32 %v256
    %v258 = vextract.high.u32 %v256
    %v259 = vmul.u32 %v252, %v243
    %v260 = vadd.s32 %v255, %v257
    %vm261 = vc.u32 %v255, %v257
    %v262 = vadd.s32 %v258, 1
    %v263 = vsel %vm261, %v262, %v258
    %v264 = vadd.s32 %v259, %v263
    %v265 = vadd.s32 %v264, 536870912
    %v266 = vshrl.u32 %v265, 30
    %v267 = vshll.u32 %v266, 30
    %v268 = vsub.s32 %v264, %v267
    %vm269 = vcmp.lt.s32.totalorder %v268, 0
    %v270 = vsub.s32 0, %v268
    %v271 = vsel %vm269, %v270, %v268
    %v272 = vclz %v271
    %v273 = vsub.s32 %v272, 2
    %vm274 = vcmp.gt.s32.totalorder 0, %v273
    %v275 = vsel %vm274, 0, %v273
    %v276 = vsub.s32 32, %v275
    %v277 = vshll.u32 %v268, %v275
    %v278 = vshrl.u32 %v260, %v276
    %v279 = vor.u32 %v277, %v278
    %v280 = vsub.s32 4294967266, %v275
    %v281 = vadd.s32 %v280, 127
    %v282 = vshll.u32 %v281, 23
    %v283 = vor.u32 4788187, %v282
    %v284 = vand.u32 2147483647, %v283
    %v286 = vcvt.s32.f32 %v279
    %v287 = vmul.f32 %v286, %v284
    %v288 = vxor.u32 %v287, 2147483648
    %v289 = vsel %vm206, %v288, %v287
    %v290 = vsub.s32 4, %v266
    %v291 = vsel %vm206, %v290, %v266
    %v292 = vsel %vm205, %v99, %v289
    %v293 = vsel %vm205, 0, %v291
    %v294 = vcosq.f32.pop %v292
    %v295 = vsinq.f32.pop %v292
    %vm296 = vweird.f32 %v99
    %v297 = vand.u32 %v293, 3
    %vm298 = vcmp.lt.s32.totalorder %v297, 2
    %vm299 = vcmp.eq.s32.totalorder %v297, 0
    %v300 = vxor.u32 %v295, 2147483648
    %v301 = vsel %vm299, %v294, %v300
    %vm302 = vcmp.eq.s32.totalorder %v297, 2
    %v303 = vxor.u32 %v294, 2147483648
    %v304 = vsel %vm302, %v303, %v295
    %v305 = vsel %vm298, %v301, %v304
    %v306 = vsel %vm296, nan, %v305
    %v307 = vld [vmem:[#allocation4] sm:$0xff]
    %v308 = vld [vmem:[#allocation4 + $0x8] sm:$0xff]
    %v309 = vld [vmem:[#allocation4 + $0x10] sm:$0xff]
    %v310 = vld [vmem:[#allocation4 + $0x18] sm:$0xff]
    %v311 = vld [vmem:[#allocation4 + $0x20] sm:$0xff]
    %v312 = vld [vmem:[#allocation4 + $0x28] sm:$0xff]
    %v313 = vld [vmem:[#allocation4 + $0x30] sm:$0xff]
    %v314 = vld [vmem:[#allocation4 + $0x38] sm:$0xff]
    %v315 = vld [vmem:[#allocation4 + $0x40] sm:$0xff]
    %v316 = vld [vmem:[#allocation4 + $0x48] sm:$0xff]
    %v317 = vld [vmem:[#allocation4 + $0x50] sm:$0xff]
    %v318 = vld [vmem:[#allocation4 + $0x58] sm:$0xff]
    %v319 = vld [vmem:[#allocation4 + $0x60] sm:$0xff]
    %v320 = vld [vmem:[#allocation4 + $0x68] sm:$0xff]
    %v321 = vld [vmem:[#allocation4 + $0x70] sm:$0xff]
    %v322 = vld [vmem:[#allocation4 + $0x78] sm:$0xff]
    %vm323 = vcmask 523264
    %v325 = vsel %vm323, %v306, 0
    %327 = vmatprep.subr.mxu0 0.0
    %328 = vmatpush1.msra.mxu0 %v315
    %329 = vmatprep.subr.mxu0 0.0
    %330 = vmatpush1.msra.mxu0 %v316
    %331 = vmatprep.subr.mxu0 0.0
    %332 = vmatpush1.msra.mxu0 %v317
    %333 = vmatprep.subr.mxu0 0.0
    %334 = vmatpush1.msra.mxu0 %v318
    %335 = vmatprep.subr.mxu0 0.0
    %336 = vmatpush1.msra.mxu0 %v319
    %337 = vmatprep.subr.mxu0 0.0
    %338 = vmatpush1.msra.mxu0 %v320
    %339 = vmatprep.subr.mxu0 0.0
    %340 = vmatpush1.msra.mxu0 %v321
    %341 = vmatprep.subr.mxu0 0.0
    %342 = vmatpush1.msra.mxu0 %v322
    %343 = vmatprep.subr.mxu0 0.0
    %344 = vmatpush1.msra.mxu0 0.0
    %345 = vmatprep.subr.mxu0 0.0
    %346 = vmatpush1.msra.mxu0 0.0
    %347 = vmatprep.subr.mxu0 0.0
    %348 = vmatpush1.msra.mxu0 0.0
    %349 = vmatprep.subr.mxu0 0.0
    %350 = vmatpush1.msra.mxu0 0.0
    %351 = vmatprep.subr.mxu0 0.0
    %352 = vmatpush1.msra.mxu0 0.0
    %353 = vmatprep.subr.mxu0 0.0
    %354 = vmatpush1.msra.mxu0 0.0
    %355 = vmatprep.subr.mxu0 0.0
    %356 = vmatpush1.msra.mxu0 0.0
    %357 = vmatprep.subr.mxu0 0.0
    %358 = vmatpush1.msra.mxu0 0.0
    %359 = vmatprep.subr.mxu0 0.0
    %360 = vmatpush1.msra.mxu0 0.0
    %361 = vmatprep.subr.mxu0 0.0
    %362 = vmatpush1.msra.mxu0 0.0
    %363 = vmatprep.subr.mxu0 0.0
    %364 = vmatpush1.msra.mxu0 0.0
    %365 = vmatprep.subr.mxu0 0.0
    %366 = vmatpush1.msra.mxu0 0.0
    %367 = vmatprep.subr.mxu0 0.0
    %368 = vmatpush1.msra.mxu0 0.0
    %369 = vmatprep.subr.mxu0 0.0
    %370 = vmatpush1.msra.mxu0 0.0
    %371 = vmatprep.subr.mxu0 0.0
    %372 = vmatpush1.msra.mxu0 0.0
    %373 = vmatprep.subr.mxu0 0.0
    %374 = vmatpush1.msra.mxu0 0.0
    %375 = vmatprep.subr.mxu0 0.0
    %376 = vmatpush1.msra.mxu0 0.0
    %377 = vmatprep.subr.mxu0 0.0
    %378 = vmatpush1.msra.mxu0 0.0
    %379 = vmatprep.subr.mxu0 0.0
    %380 = vmatpush1.msra.mxu0 0.0
    %381 = vmatprep.subr.mxu0 0.0
    %382 = vmatpush1.msra.mxu0 0.0
    %383 = vmatprep.subr.mxu0 0.0
    %384 = vmatpush1.msra.mxu0 0.0
    %385 = vmatprep.subr.mxu0 0.0
    %386 = vmatpush1.msra.mxu0 0.0
    %387 = vmatprep.subr.mxu0 0.0
    %388 = vmatpush1.msra.mxu0 0.0
    %389 = vmatprep.subr.mxu0 0.0
    %390 = vmatpush1.msra.mxu0 0.0
    %391 = vmatprep.mubr.f32.mxu0 0.0
    %392 = vmatmul.mubr.f32.gmra.mrb[0].mxu0 %v325
    %v393 = vpop.f32.mrb[0].mxu0
    %v394 = vadd.f32 0.0, %v393
    %v395 = vpop.f32.mrb[0].mxu0
    %396 = vdwg.mxu0
    %v398 = vsel %vm323, %v203, 0
    %400 = vmatprep.subr.mxu0 0.0
    %401 = vmatpush1.msra.mxu0 %v307
    %402 = vmatprep.subr.mxu0 0.0
    %403 = vmatpush1.msra.mxu0 %v308
    %404 = vmatprep.subr.mxu0 0.0
    %405 = vmatpush1.msra.mxu0 %v309
    %406 = vmatprep.subr.mxu0 0.0
    %407 = vmatpush1.msra.mxu0 %v310
    %408 = vmatprep.subr.mxu0 0.0
    %409 = vmatpush1.msra.mxu0 %v311
    %410 = vmatprep.subr.mxu0 0.0
    %411 = vmatpush1.msra.mxu0 %v312
    %412 = vmatprep.subr.mxu0 0.0
    %413 = vmatpush1.msra.mxu0 %v313
    %414 = vmatprep.subr.mxu0 0.0
    %415 = vmatpush1.msra.mxu0 %v314
    %416 = vmatprep.subr.mxu0 0.0
    %417 = vmatpush1.msra.mxu0 0.0
    %418 = vmatprep.subr.mxu0 0.0
    %419 = vmatpush1.msra.mxu0 0.0
    %420 = vmatprep.subr.mxu0 0.0
    %421 = vmatpush1.msra.mxu0 0.0
    %422 = vmatprep.subr.mxu0 0.0
    %423 = vmatpush1.msra.mxu0 0.0
    %424 = vmatprep.subr.mxu0 0.0
    %425 = vmatpush1.msra.mxu0 0.0
    %426 = vmatprep.subr.mxu0 0.0
    %427 = vmatpush1.msra.mxu0 0.0
    %428 = vmatprep.subr.mxu0 0.0
    %429 = vmatpush1.msra.mxu0 0.0
    %430 = vmatprep.subr.mxu0 0.0
    %431 = vmatpush1.msra.mxu0 0.0
    %432 = vmatprep.subr.mxu0 0.0
    %433 = vmatpush1.msra.mxu0 0.0
    %434 = vmatprep.subr.mxu0 0.0
    %435 = vmatpush1.msra.mxu0 0.0
    %436 = vmatprep.subr.mxu0 0.0
    %437 = vmatpush1.msra.mxu0 0.0
    %438 = vmatprep.subr.mxu0 0.0
    %439 = vmatpush1.msra.mxu0 0.0
    %440 = vmatprep.subr.mxu0 0.0
    %441 = vmatpush1.msra.mxu0 0.0
    %442 = vmatprep.subr.mxu0 0.0
    %443 = vmatpush1.msra.mxu0 0.0
    %444 = vmatprep.subr.mxu0 0.0
    %445 = vmatpush1.msra.mxu0 0.0
    %446 = vmatprep.subr.mxu0 0.0
    %447 = vmatpush1.msra.mxu0 0.0
    %448 = vmatprep.subr.mxu0 0.0
    %449 = vmatpush1.msra.mxu0 0.0
    %450 = vmatprep.subr.mxu0 0.0
    %451 = vmatpush1.msra.mxu0 0.0
    %452 = vmatprep.subr.mxu0 0.0
    %453 = vmatpush1.msra.mxu0 0.0
    %454 = vmatprep.subr.mxu0 0.0
    %455 = vmatpush1.msra.mxu0 0.0
    %456 = vmatprep.subr.mxu0 0.0
    %457 = vmatpush1.msra.mxu0 0.0
    %458 = vmatprep.subr.mxu0 0.0
    %459 = vmatpush1.msra.mxu0 0.0
    %460 = vmatprep.subr.mxu0 0.0
    %461 = vmatpush1.msra.mxu0 0.0
    %462 = vmatprep.subr.mxu0 0.0
    %463 = vmatpush1.msra.mxu0 0.0
    %464 = vmatprep.mubr.f32.mxu0 0.0
    %465 = vmatmul.mubr.f32.gmra.mrb[0].mxu0 %v398
    %v466 = vpop.f32.mrb[0].mxu0
    %v467 = vadd.f32 %v394, %v466
    %v468 = vpop.f32.mrb[0].mxu0
    %469 = vdwg.mxu0
    %v470 = vld [vmem:[#allocation6] sm:$0x1]
    %v472 = vlaneseq
    %v473 = vshrl.u32 %v472, 7
    %v474 = vsub.s32 0, %v473
    %v475 = vrot.slane %v470, %v474
    %v477 = vadd.f32 %v467, %v475
    %v478 = vxor.u32 %v477, 2147483648
    %v479 = vmul.f32 %v478, 1.442695
    %v480 = vpow.pop %v479
    %v481 = vadd.f32 %v480, 1.0
    %v482 = vrcp.pop %v481
    %v483 = vmul.f32 1.0, %v482
    %v484 = vmul.f32 %v477, %v483
    %v485 = vld [vmem:[#allocation7] sm:$0xff]
    %v486 = vld [vmem:[#allocation7 + $0x8] sm:$0xff]
    %v487 = vld [vmem:[#allocation7 + $0x10] sm:$0xff]
    %v488 = vld [vmem:[#allocation7 + $0x18] sm:$0xff]
    %v489 = vld [vmem:[#allocation7 + $0x20] sm:$0xff]
    %v490 = vld [vmem:[#allocation7 + $0x28] sm:$0xff]
    %v491 = vld [vmem:[#allocation7 + $0x30] sm:$0xff]
    %v492 = vld [vmem:[#allocation7 + $0x38] sm:$0xff]
    %v493 = vld [vmem:[#allocation7 + $0x40] sm:$0xff]
    %v494 = vld [vmem:[#allocation7 + $0x48] sm:$0xff]
    %v495 = vld [vmem:[#allocation7 + $0x50] sm:$0xff]
    %v496 = vld [vmem:[#allocation7 + $0x58] sm:$0xff]
    %v497 = vld [vmem:[#allocation7 + $0x60] sm:$0xff]
    %v498 = vld [vmem:[#allocation7 + $0x68] sm:$0xff]
    %v499 = vld [vmem:[#allocation7 + $0x70] sm:$0xff]
    %v500 = vld [vmem:[#allocation7 + $0x78] sm:$0xff]
    %v501 = vld [vmem:[#allocation9] sm:$0x1]
    %v503 = vlaneseq
    %v504 = vshrl.u32 %v503, 7
    %v505 = vsub.s32 0, %v504
    %v506 = vrot.slane %v501, %v505
    %508 = vmatprep.subr.mxu0 0.0
    %509 = vmatpush1.msra.mxu0 %v485
    %510 = vmatprep.subr.mxu0 0.0
    %511 = vmatpush1.msra.mxu0 %v486
    %512 = vmatprep.subr.mxu0 0.0
    %513 = vmatpush1.msra.mxu0 %v487
    %514 = vmatprep.subr.mxu0 0.0
    %515 = vmatpush1.msra.mxu0 %v488
    %516 = vmatprep.subr.mxu0 0.0
    %517 = vmatpush1.msra.mxu0 %v489
    %518 = vmatprep.subr.mxu0 0.0
    %519 = vmatpush1.msra.mxu0 %v490
    %520 = vmatprep.subr.mxu0 0.0
    %521 = vmatpush1.msra.mxu0 %v491
    %522 = vmatprep.subr.mxu0 0.0
    %523 = vmatpush1.msra.mxu0 %v492
    %524 = vmatprep.subr.mxu0 0.0
    %525 = vmatpush1.msra.mxu0 %v493
    %526 = vmatprep.subr.mxu0 0.0
    %527 = vmatpush1.msra.mxu0 %v494
    %528 = vmatprep.subr.mxu0 0.0
    %529 = vmatpush1.msra.mxu0 %v495
    %530 = vmatprep.subr.mxu0 0.0
    %531 = vmatpush1.msra.mxu0 %v496
    %532 = vmatprep.subr.mxu0 0.0
    %533 = vmatpush1.msra.mxu0 %v497
    %534 = vmatprep.subr.mxu0 0.0
    %535 = vmatpush1.msra.mxu0 %v498
    %536 = vmatprep.subr.mxu0 0.0
    %537 = vmatpush1.msra.mxu0 %v499
    %538 = vmatprep.subr.mxu0 0.0
    %539 = vmatpush1.msra.mxu0 %v500
    %540 = vmatprep.subr.mxu0 0.0
    %541 = vmatpush1.msra.mxu0 0.0
    %542 = vmatprep.subr.mxu0 0.0
    %543 = vmatpush1.msra.mxu0 0.0
    %544 = vmatprep.subr.mxu0 0.0
    %545 = vmatpush1.msra.mxu0 0.0
    %546 = vmatprep.subr.mxu0 0.0
    %547 = vmatpush1.msra.mxu0 0.0
    %548 = vmatprep.subr.mxu0 0.0
    %549 = vmatpush1.msra.mxu0 0.0
    %550 = vmatprep.subr.mxu0 0.0
    %551 = vmatpush1.msra.mxu0 0.0
    %552 = vmatprep.subr.mxu0 0.0
    %553 = vmatpush1.msra.mxu0 0.0
    %554 = vmatprep.subr.mxu0 0.0
    %555 = vmatpush1.msra.mxu0 0.0
    %556 = vmatprep.subr.mxu0 0.0
    %557 = vmatpush1.msra.mxu0 0.0
    %558 = vmatprep.subr.mxu0 0.0
    %559 = vmatpush1.msra.mxu0 0.0
    %560 = vmatprep.subr.mxu0 0.0
    %561 = vmatpush1.msra.mxu0 0.0
    %562 = vmatprep.subr.mxu0 0.0
    %563 = vmatpush1.msra.mxu0 0.0
    %564 = vmatprep.subr.mxu0 0.0
    %565 = vmatpush1.msra.mxu0 0.0
    %566 = vmatprep.subr.mxu0 0.0
    %567 = vmatpush1.msra.mxu0 0.0
    %568 = vmatprep.subr.mxu0 0.0
    %569 = vmatpush1.msra.mxu0 0.0
    %570 = vmatprep.subr.mxu0 0.0
    %571 = vmatpush1.msra.mxu0 0.0
    %572 = vmatprep.mubr.f32.mxu0 0.0
    %573 = vmatmul.mubr.f32.gmra.mrb[0].mxu0 %v484
    %v574 = vpop.f32.mrb[0].mxu0
    %v575 = vadd.f32 %v506, %v574
    %v576 = vpop.f32.mrb[0].mxu0
    %577 = vdwg.mxu0
    %v578 = vxor.u32 %v575, 2147483648
    %v579 = vmul.f32 %v578, 1.442695
    %v580 = vpow.pop %v579
    %v581 = vadd.f32 %v580, 1.0
    %v582 = vrcp.pop %v581
    %v583 = vmul.f32 1.0, %v582
    %v584 = vmul.f32 %v575, %v583
    %585 = vst [vmem:[%s6] sm:$0x3] %v584
    // Predicated region
    $region46: #{sssd_forward.2} parent=1 // pred_check
      _
    $region47: #{sssd_forward.2} parent=1 // pred_check_branch
      %587 = sbr.rel (0) target = $region49
    $region48: #{sssd_forward.2} parent=1 // pred_region
      _
    $region49: #{sssd_forward.2} parent=1 // pred_fallthru
      _
    // Predicated region
    $region50: #{sssd_forward.2} parent=1 // pred_check
      _
    $region51: #{sssd_forward.2} parent=1 // pred_check_branch
      %589 = sbr.rel (0) target = $region53
    $region52: #{sssd_forward.2} parent=1 // pred_region
      _
    $region53: #{sssd_forward.2} parent=1 // pred_fallthru
      _
    %590 = vsyncpa [#allocation3], 1
    %591 = vsyncpa [#allocation5], 1
    %592 = vsyncpa [#allocation8], 1

// kernel: sssd_forward.3
$region0: #{sssd_forward.3}
  #allocation0 [shape = 'u32[]', space=smem, size = 0x4, offset = 0x4, fixed_abs, tag = 'smem constant byte address 0x4 - core index']
  #allocation1 [shape = 'u32[144,128]{1,0:T(1,128)}', space=vmem, size = 0x12000, scoped, tag = 'internal scratch']
  #allocation2 [shape = 'f32[16,128]{1,0:T(8,128)}', space=vmem, size = 0x2000, scoped, tag = 'scratch operand']
  #allocation3 [shape = 'f32[16,128]{1,0:T(8,128)}', space=vmem, size = 0x2000, scoped, tag = 'scratch operand']
  %s0 = inlined_call_operand.vmem [shape: f32[2,4,16], index: 0, kind: input, shape index: {}]
  %s1 = inlined_call_operand.vmem [shape: f32[4,1,128], index: 1, kind: input, shape index: {}]
  %s2 = inlined_call_operand.vmem [shape: bf16[4,128], index: 2, kind: input, shape index: {}]
  %s3 = inlined_call_operand.vmem [shape: f32[1,128], index: 3, kind: input, shape index: {}]
  %s4 = inlined_call_operand.vmem [shape: bf16[2,128,256], index: 4, kind: input, shape index: {}]
  %s5 = inlined_call_operand.vmem [shape: f32[2,1,256], index: 5, kind: input, shape index: {}]
  %s6 = inlined_call_operand.vmem [shape: f32[2,1,256], index: 6, kind: input, shape index: {}]
  %s7 = inlined_call_operand.vmem [shape: f32[2,1,256], index: 7, kind: input, shape index: {}]
  %s8 = inlined_call_operand.vmem [shape: f32[2,1,256], index: 8, kind: input, shape index: {}]
  %s9 = inlined_call_operand.vmem [shape: f32[2,1,256], index: 9, kind: input, shape index: {}]
  %s10 = inlined_call_operand.hbm [shape: bf16[2,128,256], index: 10, kind: input, shape index: {}]
  %s11 = inlined_call_operand.vmem [shape: f32[2,1,256], index: 11, kind: input, shape index: {}]
  %s12 = inlined_call_operand.vmem [shape: bf16[128,128], index: 12, kind: input, shape index: {}]
  %s13 = inlined_call_operand.vmem [shape: f32[1,128], index: 13, kind: input, shape index: {}]
  %s14 = inlined_call_operand.vmem [shape: bf16[4,128], index: 14, kind: input, shape index: {}]
  %s15 = inlined_call_operand.vmem [shape: f32[4,1], index: 15, kind: input, shape index: {}]
  %s16 = inlined_call_operand.vmem [shape: f32[2], index: 16, kind: input, shape index: {}]
  %s17 = inlined_call_operand.hbm [shape: f32[2,4,16], index: 17, kind: output, shape index: {}]
  %s18 = sld [smem:[#allocation0]]
  $region117: #{sssd_forward.3} parent=0
    _
  %s20 = ssub.s32 1, %s18
  %s21 = scalar_select 0, %s20, %s18
  $region1: #{sssd_forward.3} parent=0
    #allocation4 [shape = 'u8[131072]{0}', space=vmem, size = 0x20000, scoped, tag = 'input window, operand 10, single buffered']
    #allocation5 [shape = 's32[2]{0}', space=sflag, size = 0x8, scoped, tag = 'scoped memory for sssd_forward.3']
    #allocation6 [shape = 's32[2]{0}', space=sflag, size = 0x8, scoped, tag = 'scoped memory for sssd_forward.3']
    #allocation7 [shape = 's32[2]{0}', space=sflag, size = 0x8, scoped, tag = 'scoped memory for sssd_forward.3']
    #allocation8 [shape = 'u8[512]{0}', space=smem, size = 0x200, scoped, tag = 'input window, operand 16, single buffered']
    #allocation9 [shape = 'u8[4096]{0}', space=vmem, size = 0x1000, scoped, tag = 'output window, operand 0']
    %22 = vsyncpa [#allocation5], 0
    %23 = vsyncpa [#allocation7], 0
    %24 = vsyncpa [#allocation6], 0
    %s25 = scalar_lea.sflag [#allocation6], 1
    %26 = vsyncpa %s25, 0
    loop: start=0, step=1, limit=6
    $region2: #{sssd_forward.3} parent=1 // loop_pre_header
      _
    $region3: #{sssd_forward.3} parent=1 // loop_header
      %s28 = sphi 0, %s32
      %p29 = scmp.ge.s32.totalorder %s28, 6
      %s35 = sphi 0, %s54
      %s36 = sphi 0, %s50
      %s37 = sphi 0, %s46
      %s38 = sphi 0, %s35
      %s39 = sphi 0, %s36
      %s40 = sphi 0, %s37
      %s41 = sphi 0, %s38
      %s42 = sphi 0, %s39
      %s43 = sphi 0, %s40
      %s59 = sphi 0, %s61
      %s62 = sphi 0, %s59
      %s63 = sphi 0, %s62
      %s79 = sphi 0, %s63
      %s83 = sphi 0, %s83
      %s85 = sphi 0, %s83
      %s86 = sphi 0, %s85
      %s100 = sphi 0, %s86
      %s104 = sphi 0, %s104
      %s106 = sphi 0, %s104
      %s107 = sphi 0, %s106
      %s121 = sphi 0, %s107
      %s125 = sphi 0, %s125
      %s127 = sphi 0, %s125
      %s128 = sphi 0, %s127
      %s142 = sphi 0, %s128
      %s146 = sphi 0, %s146
      %s148 = sphi 0, %s146
      %s149 = sphi 0, %s148
      %s163 = sphi 0, %s149
      %s167 = sphi 0, %s167
      %s169 = sphi 0, %s167
      %s170 = sphi 0, %s169
      %s184 = sphi 0, %s170
      %s188 = sphi 0, %s188
      %s190 = sphi 0, %s188
      %s191 = sphi 0, %s190
      %s205 = sphi 0, %s191
      %s209 = sphi 0, %s209
      %s211 = sphi 0, %s209
      %s212 = sphi 0, %s211
      %s226 = sphi 0, %s212
      %s230 = sphi 0, %s230
      %s232 = sphi 0, %s230
      %s233 = sphi 0, %s232
      %s247 = sphi 0, %s233
      %s251 = sphi 0, %s251
      %s253 = sphi 0, %s251
      %s254 = sphi 0, %s253
      %s268 = sphi 0, %s254
      %s272 = sphi 0, %s272
      %s274 = sphi 0, %s272
      %s275 = sphi 0, %s274
      %s289 = sphi 0, %s275
      %s293 = sphi 0, %s293
      %s295 = sphi 0, %s293
      %s296 = sphi 0, %s295
      %s310 = sphi 0, %s296
      %s314 = sphi 0, %s314
      %s316 = sphi 0, %s314
      %s317 = sphi 0, %s316
      %s331 = sphi 0, %s317
      %s335 = sphi 0, %s335
      %s337 = sphi 0, %s335
      %s338 = sphi 0, %s337
      %s352 = sphi 0, %s338
      %s356 = sphi 0, %s356
      %s358 = sphi 0, %s356
      %s359 = sphi 0, %s358
      %s373 = sphi 0, %s359
      %s377 = sphi 0, %s377
      %s379 = sphi 0, %s377
      %s380 = sphi 0, %s379
      %s394 = sphi 0, %s380
      %s398 = sphi 0, %s398
      %s400 = sphi 0, %s398
      %s401 = sphi 0, %s400
      %s415 = sphi 0, %s401
      %s423 = sphi 0, %s425
      %s426 = sphi 0, %s423
      %s427 = sphi 0, %s426
      %s443 = sphi 0, %s427
    $region4: #{sssd_forward.3} parent=1 // loop_header_branch
      %31 = sbr.rel (%p29) target = $region8
    $region5: #{sssd_forward.3} parent=1 // loop_body
      %s33 = ssub.s32 %s28, 1
      %s34 = ssub.s32 %s28, 2
      %s44 = sadd.s32 1, %s37
      %p45 = scmp.ge.s32.totalorder %s44, 2
      %s46 = scalar_select %p45, 0, %s44
      %s47 = sadd.s32 1, %s36
      %s48 = scalar_select %p45, %s47, %s36
      %p49 = scmp.ge.s32.totalorder %s48, 1
      %s50 = scalar_select %p49, 0, %s48
      %s51 = sadd.s32 1, %s35
      %s52 = scalar_select %p49, %s51, %s35
      %p53 = scmp.ge.s32.totalorder %s52, 2
      %s54 = scalar_select %p53, 0, %s52
      %s55 = ssub.s32 %s35, %s54
      %s56 = ssub.s32 %s36, %s50
      %s57 = sor.u32 %s55, %s56
      %p58 = scmp.eq.s32.totalorder %s57, 0
      %s60 = sadd.s32 %s59, 1
      %s61 = scalar_select %p58, %s59, %s60
      %p64 = pneg %p58
      %p65 = scmp.eq.s32.totalorder %s28, 3
      %p66 = por %p64, %p65
      %p67 = scmp.ne.s32.totalorder %s59, %s62
      %p68 = scmp.eq.s32.totalorder %s28, 0
      %p69 = por %p67, %p68
      %p70 = scmp.ne.s32.totalorder %s59, %s62
      %p71 = scmp.eq.s32.totalorder %s33, 3
      %p72 = por %p70, %p71
      %p73 = scmp.ne.s32.totalorder %s62, %s63
      %p74 = scmp.eq.s32.totalorder %s33, 0
      %p75 = por %p73, %p74
      %p76 = scmp.ne.s32.totalorder %s62, %s63
      %p77 = scmp.eq.s32.totalorder %s34, 3
      %p78 = por %p76, %p77
      %p80 = scmp.ne.s32.totalorder %s63, %s79
      %p81 = scmp.eq.s32.totalorder %s34, 0
      %p82 = por %p80, %p81
      %s84 = sadd.s32 %s83, 1
      %p87 = scmp.eq.s32.totalorder %s28, 3
      %p88 = scmp.ne.s32.totalorder %s83, %s85
      %p89 = scmp.eq.s32.totalorder %s28, 0
      %p90 = por %p88, %p89
      %p91 = scmp.ne.s32.totalorder %s83, %s85
      %p92 = scmp.eq.s32.totalorder %s33, 3
      %p93 = por %p91, %p92
      %p94 = scmp.ne.s32.totalorder %s85, %s86
      %p95 = scmp.eq.s32.totalorder %s33, 0
      %p96 = por %p94, %p95
      %p97 = scmp.ne.s32.totalorder %s85, %s86
      %p98 = scmp.eq.s32.totalorder %s34, 3
      %p99 = por %p97, %p98
      %p101 = scmp.ne.s32.totalorder %s86, %s100
      %p102 = scmp.eq.s32.totalorder %s34, 0
      %p103 = por %p101, %p102
      %s105 = sadd.s32 %s104, 1
      %p108 = scmp.eq.s32.totalorder %s28, 3
      %p109 = scmp.ne.s32.totalorder %s104, %s106
      %p110 = scmp.eq.s32.totalorder %s28, 0
      %p111 = por %p109, %p110
      %p112 = scmp.ne.s32.totalorder %s104, %s106
      %p113 = scmp.eq.s32.totalorder %s33, 3
      %p114 = por %p112, %p113
      %p115 = scmp.ne.s32.totalorder %s106, %s107
      %p116 = scmp.eq.s32.totalorder %s33, 0
      %p117 = por %p115, %p116
      %p118 = scmp.ne.s32.totalorder %s106, %s107
      %p119 = scmp.eq.s32.totalorder %s34, 3
      %p120 = por %p118, %p119
      %p122 = scmp.ne.s32.totalorder %s107, %s121
      %p123 = scmp.eq.s32.totalorder %s34, 0
      %p124 = por %p122, %p123
      %s126 = sadd.s32 %s125, 1
      %p129 = scmp.eq.s32.totalorder %s28, 3
      %p130 = scmp.ne.s32.totalorder %s125, %s127
      %p131 = scmp.eq.s32.totalorder %s28, 0
      %p132 = por %p130, %p131
      %p133 = scmp.ne.s32.totalorder %s125, %s127
      %p134 = scmp.eq.s32.totalorder %s33, 3
      %p135 = por %p133, %p134
      %p136 = scmp.ne.s32.totalorder %s127, %s128
      %p137 = scmp.eq.s32.totalorder %s33, 0
      %p138 = por %p136, %p137
      %p139 = scmp.ne.s32.totalorder %s127, %s128
      %p140 = scmp.eq.s32.totalorder %s34, 3
      %p141 = por %p139, %p140
      %p143 = scmp.ne.s32.totalorder %s128, %s142
      %p144 = scmp.eq.s32.totalorder %s34, 0
      %p145 = por %p143, %p144
      %s147 = sadd.s32 %s146, 1
      %p150 = scmp.eq.s32.totalorder %s28, 3
      %p151 = scmp.ne.s32.totalorder %s146, %s148
      %p152 = scmp.eq.s32.totalorder %s28, 0
      %p153 = por %p151, %p152
      %p154 = scmp.ne.s32.totalorder %s146, %s148
      %p155 = scmp.eq.s32.totalorder %s33, 3
      %p156 = por %p154, %p155
      %p157 = scmp.ne.s32.totalorder %s148, %s149
      %p158 = scmp.eq.s32.totalorder %s33, 0
      %p159 = por %p157, %p158
      %p160 = scmp.ne.s32.totalorder %s148, %s149
      %p161 = scmp.eq.s32.totalorder %s34, 3
      %p162 = por %p160, %p161
      %p164 = scmp.ne.s32.totalorder %s149, %s163
      %p165 = scmp.eq.s32.totalorder %s34, 0
      %p166 = por %p164, %p165
      %s168 = sadd.s32 %s167, 1
      %p171 = scmp.eq.s32.totalorder %s28, 3
      %p172 = scmp.ne.s32.totalorder %s167, %s169
      %p173 = scmp.eq.s32.totalorder %s28, 0
      %p174 = por %p172, %p173
      %p175 = scmp.ne.s32.totalorder %s167, %s169
      %p176 = scmp.eq.s32.totalorder %s33, 3
      %p177 = por %p175, %p176
      %p178 = scmp.ne.s32.totalorder %s169, %s170
      %p179 = scmp.eq.s32.totalorder %s33, 0
      %p180 = por %p178, %p179
      %p181 = scmp.ne.s32.totalorder %s169, %s170
      %p182 = scmp.eq.s32.totalorder %s34, 3
      %p183 = por %p181, %p182
      %p185 = scmp.ne.s32.totalorder %s170, %s184
      %p186 = scmp.eq.s32.totalorder %s34, 0
      %p187 = por %p185, %p186
      %s189 = sadd.s32 %s188, 1
      %p192 = scmp.eq.s32.totalorder %s28, 3
      %p193 = scmp.ne.s32.totalorder %s188, %s190
      %p194 = scmp.eq.s32.totalorder %s28, 0
      %p195 = por %p193, %p194
      %p196 = scmp.ne.s32.totalorder %s188, %s190
      %p197 = scmp.eq.s32.totalorder %s33, 3
      %p198 = por %p196, %p197
      %p199 = scmp.ne.s32.totalorder %s190, %s191
      %p200 = scmp.eq.s32.totalorder %s33, 0
      %p201 = por %p199, %p200
      %p202 = scmp.ne.s32.totalorder %s190, %s191
      %p203 = scmp.eq.s32.totalorder %s34, 3
      %p204 = por %p202, %p203
      %p206 = scmp.ne.s32.totalorder %s191, %s205
      %p207 = scmp.eq.s32.totalorder %s34, 0
      %p208 = por %p206, %p207
      %s210 = sadd.s32 %s209, 1
      %p213 = scmp.eq.s32.totalorder %s28, 3
      %p214 = scmp.ne.s32.totalorder %s209, %s211
      %p215 = scmp.eq.s32.totalorder %s28, 0
      %p216 = por %p214, %p215
      %p217 = scmp.ne.s32.totalorder %s209, %s211
      %p218 = scmp.eq.s32.totalorder %s33, 3
      %p219 = por %p217, %p218
      %p220 = scmp.ne.s32.totalorder %s211, %s212
      %p221 = scmp.eq.s32.totalorder %s33, 0
      %p222 = por %p220, %p221
      %p223 = scmp.ne.s32.totalorder %s211, %s212
      %p224 = scmp.eq.s32.totalorder %s34, 3
      %p225 = por %p223, %p224
      %p227 = scmp.ne.s32.totalorder %s212, %s226
      %p228 = scmp.eq.s32.totalorder %s34, 0
      %p229 = por %p227, %p228
      %s231 = sadd.s32 %s230, 1
      %p234 = scmp.eq.s32.totalorder %s28, 3
      %p235 = scmp.ne.s32.totalorder %s230, %s232
      %p236 = scmp.eq.s32.totalorder %s28, 0
      %p237 = por %p235, %p236
      %p238 = scmp.ne.s32.totalorder %s230, %s232
      %p239 = scmp.eq.s32.totalorder %s33, 3
      %p240 = por %p238, %p239
      %p241 = scmp.ne.s32.totalorder %s232, %s233
      %p242 = scmp.eq.s32.totalorder %s33, 0
      %p243 = por %p241, %p242
      %p244 = scmp.ne.s32.totalorder %s232, %s233
      %p245 = scmp.eq.s32.totalorder %s34, 3
      %p246 = por %p244, %p245
      %p248 = scmp.ne.s32.totalorder %s233, %s247
      %p249 = scmp.eq.s32.totalorder %s34, 0
      %p250 = por %p248, %p249
      %s252 = sadd.s32 %s251, 1
      %p255 = scmp.eq.s32.totalorder %s28, 3
      %p256 = scmp.ne.s32.totalorder %s251, %s253
      %p257 = scmp.eq.s32.totalorder %s28, 0
      %p258 = por %p256, %p257
      %p259 = scmp.ne.s32.totalorder %s251, %s253
      %p260 = scmp.eq.s32.totalorder %s33, 3
      %p261 = por %p259, %p260
      %p262 = scmp.ne.s32.totalorder %s253, %s254
      %p263 = scmp.eq.s32.totalorder %s33, 0
      %p264 = por %p262, %p263
      %p265 = scmp.ne.s32.totalorder %s253, %s254
      %p266 = scmp.eq.s32.totalorder %s34, 3
      %p267 = por %p265, %p266
      %p269 = scmp.ne.s32.totalorder %s254, %s268
      %p270 = scmp.eq.s32.totalorder %s34, 0
      %p271 = por %p269, %p270
      %s273 = sadd.s32 %s272, 1
      %p276 = scmp.eq.s32.totalorder %s28, 3
      %p277 = scmp.ne.s32.totalorder %s272, %s274
      %p278 = scmp.eq.s32.totalorder %s28, 0
      %p279 = por %p277, %p278
      %p280 = scmp.ne.s32.totalorder %s272, %s274
      %p281 = scmp.eq.s32.totalorder %s33, 3
      %p282 = por %p280, %p281
      %p283 = scmp.ne.s32.totalorder %s274, %s275
      %p284 = scmp.eq.s32.totalorder %s33, 0
      %p285 = por %p283, %p284
      %p286 = scmp.ne.s32.totalorder %s274, %s275
      %p287 = scmp.eq.s32.totalorder %s34, 3
      %p288 = por %p286, %p287
      %p290 = scmp.ne.s32.totalorder %s275, %s289
      %p291 = scmp.eq.s32.totalorder %s34, 0
      %p292 = por %p290, %p291
      %s294 = sadd.s32 %s293, 1
      %p297 = scmp.eq.s32.totalorder %s28, 3
      %p298 = scmp.ne.s32.totalorder %s293, %s295
      %p299 = scmp.eq.s32.totalorder %s28, 0
      %p300 = por %p298, %p299
      %p301 = scmp.ne.s32.totalorder %s293, %s295
      %p302 = scmp.eq.s32.totalorder %s33, 3
      %p303 = por %p301, %p302
      %p304 = scmp.ne.s32.totalorder %s295, %s296
      %p305 = scmp.eq.s32.totalorder %s33, 0
      %p306 = por %p304, %p305
      %p307 = scmp.ne.s32.totalorder %s295, %s296
      %p308 = scmp.eq.s32.totalorder %s34, 3
      %p309 = por %p307, %p308
      %p311 = scmp.ne.s32.totalorder %s296, %s310
      %p312 = scmp.eq.s32.totalorder %s34, 0
      %p313 = por %p311, %p312
      %s315 = sadd.s32 %s314, 1
      %p318 = scmp.eq.s32.totalorder %s28, 3
      %p319 = scmp.ne.s32.totalorder %s314, %s316
      %p320 = scmp.eq.s32.totalorder %s28, 0
      %p321 = por %p319, %p320
      %p322 = scmp.ne.s32.totalorder %s314, %s316
      %p323 = scmp.eq.s32.totalorder %s33, 3
      %p324 = por %p322, %p323
      %p325 = scmp.ne.s32.totalorder %s316, %s317
      %p326 = scmp.eq.s32.totalorder %s33, 0
      %p327 = por %p325, %p326
      %p328 = scmp.ne.s32.totalorder %s316, %s317
      %p329 = scmp.eq.s32.totalorder %s34, 3
      %p330 = por %p328, %p329
      %p332 = scmp.ne.s32.totalorder %s317, %s331
      %p333 = scmp.eq.s32.totalorder %s34, 0
      %p334 = por %p332, %p333
      %s336 = sadd.s32 %s335, 1
      %p339 = scmp.eq.s32.totalorder %s28, 3
      %p340 = scmp.ne.s32.totalorder %s335, %s337
      %p341 = scmp.eq.s32.totalorder %s28, 0
      %p342 = por %p340, %p341
      %p343 = scmp.ne.s32.totalorder %s335, %s337
      %p344 = scmp.eq.s32.totalorder %s33, 3
      %p345 = por %p343, %p344
      %p346 = scmp.ne.s32.totalorder %s337, %s338
      %p347 = scmp.eq.s32.totalorder %s33, 0
      %p348 = por %p346, %p347
      %p349 = scmp.ne.s32.totalorder %s337, %s338
      %p350 = scmp.eq.s32.totalorder %s34, 3
      %p351 = por %p349, %p350
      %p353 = scmp.ne.s32.totalorder %s338, %s352
      %p354 = scmp.eq.s32.totalorder %s34, 0
      %p355 = por %p353, %p354
      %s357 = sadd.s32 %s356, 1
      %p360 = scmp.eq.s32.totalorder %s28, 3
      %p361 = scmp.ne.s32.totalorder %s356, %s358
      %p362 = scmp.eq.s32.totalorder %s28, 0
      %p363 = por %p361, %p362
      %p364 = scmp.ne.s32.totalorder %s356, %s358
      %p365 = scmp.eq.s32.totalorder %s33, 3
      %p366 = por %p364, %p365
      %p367 = scmp.ne.s32.totalorder %s358, %s359
      %p368 = scmp.eq.s32.totalorder %s33, 0
      %p369 = por %p367, %p368
      %p370 = scmp.ne.s32.totalorder %s358, %s359
      %p371 = scmp.eq.s32.totalorder %s34, 3
      %p372 = por %p370, %p371
      %p374 = scmp.ne.s32.totalorder %s359, %s373
      %p375 = scmp.eq.s32.totalorder %s34, 0
      %p376 = por %p374, %p375
      %s378 = sadd.s32 %s377, 1
      %p381 = scmp.eq.s32.totalorder %s28, 3
      %p382 = scmp.ne.s32.totalorder %s377, %s379
      %p383 = scmp.eq.s32.totalorder %s28, 0
      %p384 = por %p382, %p383
      %p385 = scmp.ne.s32.totalorder %s377, %s379
      %p386 = scmp.eq.s32.totalorder %s33, 3
      %p387 = por %p385, %p386
      %p388 = scmp.ne.s32.totalorder %s379, %s380
      %p389 = scmp.eq.s32.totalorder %s33, 0
      %p390 = por %p388, %p389
      %p391 = scmp.ne.s32.totalorder %s379, %s380
      %p392 = scmp.eq.s32.totalorder %s34, 3
      %p393 = por %p391, %p392
      %p395 = scmp.ne.s32.totalorder %s380, %s394
      %p396 = scmp.eq.s32.totalorder %s34, 0
      %p397 = por %p395, %p396
      %s399 = sadd.s32 %s398, 1
      %p402 = scmp.eq.s32.totalorder %s28, 3
      %p403 = scmp.ne.s32.totalorder %s398, %s400
      %p404 = scmp.eq.s32.totalorder %s28, 0
      %p405 = por %p403, %p404
      %p406 = scmp.ne.s32.totalorder %s398, %s400
      %p407 = scmp.eq.s32.totalorder %s33, 3
      %p408 = por %p406, %p407
      %p409 = scmp.ne.s32.totalorder %s400, %s401
      %p410 = scmp.eq.s32.totalorder %s33, 0
      %p411 = por %p409, %p410
      %p412 = scmp.ne.s32.totalorder %s400, %s401
      %p413 = scmp.eq.s32.totalorder %s34, 3
      %p414 = por %p412, %p413
      %p416 = scmp.ne.s32.totalorder %s401, %s415
      %p417 = scmp.eq.s32.totalorder %s34, 0
      %p418 = por %p416, %p417
      %s419 = ssub.s32 %s35, %s54
      %s420 = ssub.s32 %s36, %s50
      %s421 = sor.u32 %s419, %s420
      %p422 = scmp.eq.s32.totalorder %s421, 0
      %s424 = sadd.s32 %s423, 1
      %s425 = scalar_select %p422, %s423, %s424
      %p428 = pneg %p422
      %p429 = scmp.eq.s32.totalorder %s28, 3
      %p430 = por %p428, %p429
      %p431 = scmp.ne.s32.totalorder %s423, %s426
      %p432 = scmp.eq.s32.totalorder %s28, 0
      %p433 = por %p431, %p432
      %p434 = scmp.ne.s32.totalorder %s423, %s426
      %p435 = scmp.eq.s32.totalorder %s33, 3
      %p436 = por %p434, %p435
      %p437 = scmp.ne.s32.totalorder %s426, %s427
      %p438 = scmp.eq.s32.totalorder %s33, 0
      %p439 = por %p437, %p438
      %p440 = scmp.ne.s32.totalorder %s426, %s427
      %p441 = scmp.eq.s32.totalorder %s34, 3
      %p442 = por %p440, %p441
      %p444 = scmp.ne.s32.totalorder %s427, %s443
      %p445 = scmp.eq.s32.totalorder %s34, 0
      %p446 = por %p444, %p445
      %p447 = scmp.le.s32.totalorder 1, %s28
      %p448 = scmp.lt.s32.totalorder %s28, 5
      %p449 = pnand %p447, %p448
      %p450 = pneg %p449
      // Predicated region
      $region9: #{sssd_forward.3} parent=5 // pred_check
        _
      $region10: #{sssd_forward.3} parent=5 // pred_check_branch
        %452 = sbr.rel (%p449) target = $region12
      $region11: #{sssd_forward.3} parent=5 // pred_region
        %s453 = ssub.s32 %s28, 1
        // Predicated region
        $region13: #{sssd_forward.3} parent=11 // pred_check
          %p454 = pneg %p96
        $region14: #{sssd_forward.3} parent=11 // pred_check_branch
          %456 = sbr.rel (%p454) target = $region16
        $region15: #{sssd_forward.3} parent=11 // pred_region
          _
        $region16: #{sssd_forward.3} parent=11 // pred_fallthru
          _
        // Predicated region
        $region17: #{sssd_forward.3} parent=11 // pred_check
          %p457 = pneg %p117
        $region18: #{sssd_forward.3} parent=11 // pred_check_branch
          %459 = sbr.rel (%p457) target = $region20
        $region19: #{sssd_forward.3} parent=11 // pred_region
          _
        $region20: #{sssd_forward.3} parent=11 // pred_fallthru
          _
        // Predicated region
        $region21: #{sssd_forward.3} parent=11 // pred_check
          %p460 = pneg %p138
        $region22: #{sssd_forward.3} parent=11 // pred_check_branch
          %462 = sbr.rel (%p460) target = $region24
        $region23: #{sssd_forward.3} parent=11 // pred_region
          _
        $region24: #{sssd_forward.3} parent=11 // pred_fallthru
          _
        // Predicated region
        $region25: #{sssd_forward.3} parent=11 // pred_check
          %p463 = pneg %p159
        $region26: #{sssd_forward.3} parent=11 // pred_check_branch
          %465 = sbr.rel (%p463) target = $region28
        $region27: #{sssd_forward.3} parent=11 // pred_region
          _
        $region28: #{sssd_forward.3} parent=11 // pred_fallthru
          _
        // Predicated region
        $region29: #{sssd_forward.3} parent=11 // pred_check
          %p466 = pneg %p180
        $region30: #{sssd_forward.3} parent=11 // pred_check_branch
          %468 = sbr.rel (%p466) target = $region32
        $region31: #{sssd_forward.3} parent=11 // pred_region
          _
        $region32: #{sssd_forward.3} parent=11 // pred_fallthru
          _
        // Predicated region
        $region33: #{sssd_forward.3} parent=11 // pred_check
          %p469 = pneg %p201
        $region34: #{sssd_forward.3} parent=11 // pred_check_branch
          %471 = sbr.rel (%p469) target = $region36
        $region35: #{sssd_forward.3} parent=11 // pred_region
          _
        $region36: #{sssd_forward.3} parent=11 // pred_fallthru
          _
        // Predicated region
        $region37: #{sssd_forward.3} parent=11 // pred_check
          %p472 = pneg %p222
        $region38: #{sssd_forward.3} parent=11 // pred_check_branch
          %474 = sbr.rel (%p472) target = $region40
        $region39: #{sssd_forward.3} parent=11 // pred_region
          _
        $region40: #{sssd_forward.3} parent=11 // pred_fallthru
          _
        // Predicated region
        $region41: #{sssd_forward.3} parent=11 // pred_check
          %p475 = pneg %p243
        $region42: #{sssd_forward.3} parent=11 // pred_check_branch
          %477 = sbr.rel (%p475) target = $region44
        $region43: #{sssd_forward.3} parent=11 // pred_region
          _
        $region44: #{sssd_forward.3} parent=11 // pred_fallthru
          _
        // Predicated region
        $region45: #{sssd_forward.3} parent=11 // pred_check
          %p478 = pneg %p264
        $region46: #{sssd_forward.3} parent=11 // pred_check_branch
          %480 = sbr.rel (%p478) target = $region48
        $region47: #{sssd_forward.3} parent=11 // pred_region
          _
        $region48: #{sssd_forward.3} parent=11 // pred_fallthru
          _
        // Predicated region
        $region49: #{sssd_forward.3} parent=11 // pred_check
          %p481 = pneg %p285
        $region50: #{sssd_forward.3} parent=11 // pred_check_branch
          %483 = sbr.rel (%p481) target = $region52
        $region51: #{sssd_forward.3} parent=11 // pred_region
          %s485 = ssub.s32 4096, 4096
          %486 = vsyncadd [#allocation5], %s485
          %s487 = sshll.u32 [#allocation4], 4
          %s488 = int_to_ptr.vmem [resolvable:$true] %s487
          %493 = dma.hbm_to_vmem [thread:$0]  %s10, 4096, %s488, [#allocation5], 128, 128, 8
        $region52: #{sssd_forward.3} parent=11 // pred_fallthru
          _
        // Predicated region
        $region53: #{sssd_forward.3} parent=11 // pred_check
          %p494 = pneg %p306
        $region54: #{sssd_forward.3} parent=11 // pred_check_branch
          %496 = sbr.rel (%p494) target = $region56
        $region55: #{sssd_forward.3} parent=11 // pred_region
          _
        $region56: #{sssd_forward.3} parent=11 // pred_fallthru
          _
        // Predicated region
        $region57: #{sssd_forward.3} parent=11 // pred_check
          %p497 = pneg %p327
        $region58: #{sssd_forward.3} parent=11 // pred_check_branch
          %499 = sbr.rel (%p497) target = $region60
        $region59: #{sssd_forward.3} parent=11 // pred_region
          _
        $region60: #{sssd_forward.3} parent=11 // pred_fallthru
          _
        // Predicated region
        $region61: #{sssd_forward.3} parent=11 // pred_check
          %p500 = pneg %p348
        $region62: #{sssd_forward.3} parent=11 // pred_check_branch
          %502 = sbr.rel (%p500) target = $region64
        $region63: #{sssd_forward.3} parent=11 // pred_region
          _
        $region64: #{sssd_forward.3} parent=11 // pred_fallthru
          _
        // Predicated region
        $region65: #{sssd_forward.3} parent=11 // pred_check
          %p503 = pneg %p369
        $region66: #{sssd_forward.3} parent=11 // pred_check_branch
          %505 = sbr.rel (%p503) target = $region68
        $region67: #{sssd_forward.3} parent=11 // pred_region
          _
        $region68: #{sssd_forward.3} parent=11 // pred_fallthru
          _
        // Predicated region
        $region69: #{sssd_forward.3} parent=11 // pred_check
          %p506 = pneg %p390
        $region70: #{sssd_forward.3} parent=11 // pred_check_branch
          %508 = sbr.rel (%p506) target = $region72
        $region71: #{sssd_forward.3} parent=11 // pred_region
          _
        $region72: #{sssd_forward.3} parent=11 // pred_fallthru
          _
        // Predicated region
        $region73: #{sssd_forward.3} parent=11 // pred_check
          %p509 = pneg %p411
        $region74: #{sssd_forward.3} parent=11 // pred_check_branch
          %511 = sbr.rel (%p509) target = $region76
        $region75: #{sssd_forward.3} parent=11 // pred_region
          %s513 = ssub.s32 16, 16
          %514 = vsyncadd [#allocation7], %s513
          %s516 = sshll.u32 %s16, 4
          %s517 = int_to_ptr.vmem [resolvable:$true] %s516
          %519 = dma.vmem_to_smem %s517, 16, [#allocation8], [#allocation7]
        $region76: #{sssd_forward.3} parent=11 // pred_fallthru
          _
      $region12: #{sssd_forward.3} parent=5 // pred_fallthru
        _
      %p520 = scmp.lt.s32.totalorder %s28, 4
      // Predicated region
      $region77: #{sssd_forward.3} parent=5 // pred_check
        %p521 = pneg %p520
      $region78: #{sssd_forward.3} parent=5 // pred_check_branch
        %523 = sbr.rel (%p521) target = $region80
      $region79: #{sssd_forward.3} parent=5 // pred_region
        // Predicated region
        $region81: #{sssd_forward.3} parent=79 // pred_check
          %p524 = pneg %p69
        $region82: #{sssd_forward.3} parent=79 // pred_check_branch
          %526 = sbr.rel (%p524) target = $region84
        $region83: #{sssd_forward.3} parent=79 // pred_region
          %p527 = scmp.lt.s32.totalorder %s35, 1
          %s528 = scalar_select %p527, %s35, 1
          %p529 = scmp.lt.s32.totalorder %s36, 0
          %s530 = scalar_select %p529, %s36, 0
          %s531 = sadd.s32 %s530, %s528
          %s532 = smul.addr %s531, 4
          %s533 = scalar_lea.vmem %s0, %s532
        $region84: #{sssd_forward.3} parent=79 // pred_fallthru
          _
      $region80: #{sssd_forward.3} parent=5 // pred_fallthru
        _
      %p534 = scmp.le.s32.totalorder 1, %s28
      %p535 = scmp.lt.s32.totalorder %s28, 5
      %p536 = pnand %p534, %p535
      %p537 = pneg %p536
      // Predicated region
      $region85: #{sssd_forward.3} parent=5 // pred_check
        _
      $region86: #{sssd_forward.3} parent=5 // pred_check_branch
        %539 = sbr.rel (%p536) target = $region88
      $region87: #{sssd_forward.3} parent=5 // pred_region
        %s540 = ssub.s32 %s28, 1
        // Predicated region
        $region89: #{sssd_forward.3} parent=87 // pred_check
          %p541 = pneg %p285
        $region90: #{sssd_forward.3} parent=87 // pred_check_branch
          %543 = sbr.rel (%p541) target = $region92
        $region91: #{sssd_forward.3} parent=87 // pred_region
          %544 = dma.done [#allocation5], 4096
        $region92: #{sssd_forward.3} parent=87 // pred_fallthru
          _
        // Predicated region
        $region93: #{sssd_forward.3} parent=87 // pred_check
          %p545 = pneg %p411
        $region94: #{sssd_forward.3} parent=87 // pred_check_branch
          %547 = sbr.rel (%p545) target = $region96
        $region95: #{sssd_forward.3} parent=87 // pred_region
          %548 = dma.done [#allocation7], 16
        $region96: #{sssd_forward.3} parent=87 // pred_fallthru
          _
        %549 = sfence
        %p550 = scmp.lt.s32.totalorder %s38, 1
        %s551 = scalar_select %p550, %s38, 1
        %p552 = scmp.lt.s32.totalorder %s39, 0
        %s553 = scalar_select %p552, %s39, 0
        %s554 = sadd.s32 %s553, %s551
        %s555 = smul.addr %s554, 4
        %s556 = scalar_lea.vmem %s0, %s555
        %p557 = pneg %p75
        %p558 = pneg %p72
        %p559 = pneg %p96
        %p560 = pneg %p93
        %p561 = pneg %p117
        %p562 = pneg %p114
        %p563 = pneg %p138
        %p564 = pneg %p135
        %p565 = pneg %p159
        %p566 = pneg %p156
        %p567 = pneg %p180
        %p568 = pneg %p177
        %p569 = pneg %p201
        %p570 = pneg %p198
        %p571 = pneg %p222
        %p572 = pneg %p219
        %p573 = pneg %p243
        %p574 = pneg %p240
        %p575 = pneg %p264
        %p576 = pneg %p261
        %p577 = pneg %p285
        %p578 = pneg %p282
        %p579 = pneg %p306
        %p580 = pneg %p303
        %p581 = pneg %p327
        %p582 = pneg %p324
        %p583 = pneg %p348
        %p584 = pneg %p345
        %p585 = pneg %p369
        %p586 = pneg %p366
        %p587 = pneg %p390
        %p588 = pneg %p387
        %p589 = pneg %p411
        %p590 = pneg %p408
        %p591 = pneg %p439
        %p592 = pneg %p436
        %s593 = sand.u32 %s426, 1
        %s594 = scalar_lea.sflag [#allocation6], %s593
        %s595 = sand.u32 %s426, 1
        %s596 = smul.addr %s595, 4
        %s597 = scalar_lea.vmem [#allocation9], %s596
        %p598 = scmp.lt.s32.totalorder %s38, 1
        %s599 = scalar_select %p598, %s38, 1
        %p600 = scmp.lt.s32.totalorder %s39, 0
        %s601 = scalar_select %p600, %s39, 0
        %s602 = sadd.s32 %s601, %s599
        %s603 = smul.addr %s602, 4
        %s604 = scalar_lea.vmem %s0, %s603
        %p606 = scmp.eq.s32.totalorder %s40, 0
        // Predicated region
        $region97: #{sssd_forward.3} parent=87 // pred_check
          %p607 = pneg %p606
        $region98: #{sssd_forward.3} parent=87 // pred_check_branch
          %609 = sbr.rel (%p607) target = $region100
        $region99: #{sssd_forward.3} parent=87 // pred_region
          %v610 = vld [vmem:[%s604] sm:$0xf]
          %v611 = vpack.c.bf16 %v610, %v610
          %v612 = vld [vmem:[%s2] sm:$0x3]
          %v613 = vld [vmem:[%s3] sm:$0x1]
          %v615 = vlaneseq
          %v616 = vshrl.u32 %v615, 7
          %v617 = vsub.s32 0, %v616
          %v618 = vrot.slane %v613, %v617
          %620 = vxpose.xlu0.c.b16.start [1/8] %v611, 128
          %621 = vxpose.xlu0.c.b16.cont [2/8] 0, 128
          %622 = vxpose.xlu0.c.b16.cont [3/8] 0, 128
          %623 = vxpose.xlu0.c.b16.cont [4/8] 0, 128
          %624 = vxpose.xlu0.c.b16.cont [5/8] 0, 128
          %625 = vxpose.xlu0.c.b16.cont [6/8] 0, 128
          %626 = vxpose.xlu0.c.b16.cont [7/8] 0, 128
          %627 = vxpose.xlu0.c.b16.end [8/8] 0, 128
          %v628 = vpop.trf.xlu0
          %v629 = vpop.trf.xlu0
          %v630 = vpop.trf.xlu0
          %v631 = vpop.trf.xlu0
          %v632 = vpop.trf.xlu0
          %v633 = vpop.trf.xlu0
          %v634 = vpop.trf.xlu0
          %v635 = vpop.trf.xlu0
          %vm636 = vcmask 31744
          %v638 = vsel %vm636, %v628, 0
          %vm640 = vcmask 1041408
          %v642 = vsel %vm640, %v612, 0
          %644 = vmatprep.subr.bf16.mxu0 0
          %645 = vmatpush1.bf16.msra.mxu0 %v642
          %646 = vmatprep.subr.bf16.mxu0 0
          %647 = vmatpush1.bf16.msra.mxu0 0
          %648 = vmatprep.subr.bf16.mxu0 0
          %649 = vmatpush1.bf16.msra.mxu0 0
          %650 = vmatprep.subr.bf16.mxu0 0
          %651 = vmatpush1.bf16.msra.mxu0 0
          %652 = vmatprep.subr.bf16.mxu0 0
          %653 = vmatpush1.bf16.msra.mxu0 0
          %654 = vmatprep.subr.bf16.mxu0 0
          %655 = vmatpush1.bf16.msra.mxu0 0
          %656 = vmatprep.subr.bf16.mxu0 0
          %657 = vmatpush1.bf16.msra.mxu0 0
          %658 = vmatprep.subr.bf16.mxu0 0
          %659 = vmatpush1.bf16.msra.mxu0 0
          %660 = vmatprep.subr.bf16.mxu0 0
          %661 = vmatpush1.bf16.msra.mxu0 0
          %662 = vmatprep.subr.bf16.mxu0 0
          %663 = vmatpush1.bf16.msra.mxu0 0
          %664 = vmatprep.subr.bf16.mxu0 0
          %665 = vmatpush1.bf16.msra.mxu0 0
          %666 = vmatprep.subr.bf16.mxu0 0
          %667 = vmatpush1.bf16.msra.mxu0 0
          %668 = vmatprep.subr.bf16.mxu0 0
          %669 = vmatpush1.bf16.msra.mxu0 0
          %670 = vmatprep.subr.bf16.mxu0 0
          %671 = vmatpush1.bf16.msra.mxu0 0
          %672 = vmatprep.subr.bf16.mxu0 0
          %673 = vmatpush1.bf16.msra.mxu0 0
          %674 = vmatprep.subr.bf16.mxu0 0
          %675 = vmatpush1.bf16.msra.mxu0 0
          %676 = vmatprep.mubr.bf16.mxu0 0
          %677 = vmatmul.mubr.bf16.gmra.mrb[0].mxu0 %v638
          %v678 = vpop.f32.mrb[0].mxu0
          %v679 = vadd.f32 %v618, %v678
          %v680 = vpop.f32.mrb[0].mxu0
          %v681 = vpop.f32.mrb[0].mxu0
          %v682 = vadd.f32 %v618, %v681
          %v683 = vpop.f32.mrb[0].mxu0
          %684 = vdwg.mxu0
          %685 = vst [vmem:[#allocation2] sm:$0xff] %v679
          %686 = vst [vmem:[#allocation2 + $0x8] sm:$0xff] %v682
          %687 = vst [vmem:[#allocation3] sm:$0xff] 0.0
          %688 = vst [vmem:[#allocation3 + $0x8] sm:$0xff] 0.0
        $region100: #{sssd_forward.3} parent=87 // pred_fallthru
          _
        %v689 = vld [vmem:[#allocation2] sm:$0xff]
        %v690 = vld [vmem:[#allocation2 + $0x8] sm:$0xff]
        %s691 = smul.u32 %s38, 2
        %s692 = sadd.s32 %s691, %s40
        %s693 = scalar_lea.vmem %s1, %s692
        %v694 = vld [vmem:[%s693] sm:$0x1]
        %v696 = vlaneseq
        %v697 = vshrl.u32 %v696, 7
        %v698 = vsub.s32 0, %v697
        %v699 = vrot.slane %v694, %v698
        %v701 = vadd.f32 %v689, %v699
        %v702 = vadd.f32 %v690, %v699
        %v703 = vpack.c.bf16 %v702, %v701
        %s704 = smul.u32 %s40, 32
        %s705 = smul.addr %s704, 4
        %s706 = scalar_lea.vmem %s4, %s705
        %v707 = vld [vmem:[%s706] sm:$0xff]
        %v708 = vld [vmem:[%s706 + $0x8] sm:$0xff]
        %v709 = vld [vmem:[%s706 + $0x10] sm:$0xff]
        %v710 = vld [vmem:[%s706 + $0x18] sm:$0xff]
        %v711 = vld [vmem:[%s706 + $0x20] sm:$0xff]
        %v712 = vld [vmem:[%s706 + $0x28] sm:$0xff]
        %v713 = vld [vmem:[%s706 + $0x30] sm:$0xff]
        %v714 = vld [vmem:[%s706 + $0x38] sm:$0xff]
        %v715 = vld [vmem:[%s706 + $0x40] sm:$0xff]
        %v716 = vld [vmem:[%s706 + $0x48] sm:$0xff]
        %v717 = vld [vmem:[%s706 + $0x50] sm:$0xff]
        %v718 = vld [vmem:[%s706 + $0x58] sm:$0xff]
        %v719 = vld [vmem:[%s706 + $0x60] sm:$0xff]
        %v720 = vld [vmem:[%s706 + $0x68] sm:$0xff]
        %v721 = vld [vmem:[%s706 + $0x70] sm:$0xff]
        %v722 = vld [vmem:[%s706 + $0x78] sm:$0xff]
        %s723 = smul.u32 %s40, 2
        %s724 = scalar_lea.vmem %s5, %s723
        %v725 = vld [vmem:[%s724] sm:$0x3]
        %v727 = vlaneseq
        %v728 = vshrl.u32 %v727, 7
        %v729 = vsub.s32 0, %v728
        %v730 = vrot.slane %v725, %v729
        %v731 = vlaneseq
        %v732 = vshrl.u32 %v731, 7
        %v733 = vsub.s32 1, %v732
        %v734 = vrot.slane %v725, %v733
        %v753 = vunpack.c.l.b16 %v707
        %v754 = vunpack.c.h.b16 %v707
        %v755 = vunpack.c.l.b16 %v708
        %v756 = vunpack.c.h.b16 %v708
        %v757 = vunpack.c.l.b16 %v709
        %v758 = vunpack.c.h.b16 %v709
        %v759 = vunpack.c.l.b16 %v710
        %v760 = vunpack.c.h.b16 %v710
        %v761 = vunpack.c.l.b16 %v711
        %v762 = vunpack.c.h.b16 %v711
        %v763 = vunpack.c.l.b16 %v712
        %v764 = vunpack.c.h.b16 %v712
        %v765 = vunpack.c.l.b16 %v713
        %v766 = vunpack.c.h.b16 %v713
        %v767 = vunpack.c.l.b16 %v714
        %v768 = vunpack.c.h.b16 %v714
        %v769 = vunpack.c.l.b16 %v715
        %v770 = vunpack.c.h.b16 %v715
        %v771 = vunpack.c.l.b16 %v716
        %v772 = vunpack.c.h.b16 %v716
        %v773 = vunpack.c.l.b16 %v717
        %v774 = vunpack.c.h.b16 %v717
        %v775 = vunpack.c.l.b16 %v718
        %v776 = vunpack.c.h.b16 %v718
        %v777 = vunpack.c.l.b16 %v719
        %v778 = vunpack.c.h.b16 %v719
        %v779 = vunpack.c.l.b16 %v720
        %v780 = vunpack.c.h.b16 %v720
        %v781 = vunpack.c.l.b16 %v721
        %v782 = vunpack.c.h.b16 %v721
        %v783 = vunpack.c.l.b16 %v722
        %v784 = vunpack.c.h.b16 %v722
        %v785 = vpack.c.b16 %v755, %v753
        %v786 = vpack.c.b16 %v756, %v754
        %v787 = vpack.c.b16 %v759, %v757
        %v788 = vpack.c.b16 %v760, %v758
        %v789 = vpack.c.b16 %v763, %v761
        %v790 = vpack.c.b16 %v764, %v762
        %v791 = vpack.c.b16 %v767, %v765
        %v792 = vpack.c.b16 %v768, %v766
        %v793 = vpack.c.b16 %v771, %v769
        %v794 = vpack.c.b16 %v772, %v770
        %v795 = vpack.c.b16 %v775, %v773
        %v796 = vpack.c.b16 %v776, %v774
        %v797 = vpack.c.b16 %v779, %v777
        %v798 = vpack.c.b16 %v780, %v778
        %v799 = vpack.c.b16 %v783, %v781
        %v800 = vpack.c.b16 %v784, %v782
        %817 = vmatprep.subr.bf16.mxu0 %v786
        %818 = vmatpush1.bf16.msra.mxu0 %v785
        %819 = vmatprep.subr.bf16.mxu0 %v788
        %820 = vmatpush1.bf16.msra.mxu0 %v787
        %821 = vmatprep.subr.bf16.mxu0 %v790
        %822 = vmatpush1.bf16.msra.mxu0 %v789
        %823 = vmatprep.subr.bf16.mxu0 %v792
        %824 = vmatpush1.bf16.msra.mxu0 %v791
        %825 = vmatprep.subr.bf16.mxu0 %v794
        %826 = vmatpush1.bf16.msra.mxu0 %v793
        %827 = vmatprep.subr.bf16.mxu0 %v796
        %828 = vmatpush1.bf16.msra.mxu0 %v795
        %829 = vmatprep.subr.bf16.mxu0 %v798
        %830 = vmatpush1.bf16.msra.mxu0 %v797
        %831 = vmatprep.subr.bf16.mxu0 %v800
        %832 = vmatpush1.bf16.msra.mxu0 %v799
        %833 = vmatprep.subr.bf16.mxu0 0
        %834 = vmatpush1.bf16.msra.mxu0 0
        %835 = vmatprep.subr.bf16.mxu0 0
        %836 = vmatpush1.bf16.msra.mxu0 0
        %837 = vmatprep.subr.bf16.mxu0 0
        %838 = vmatpush1.bf16.msra.mxu0 0
        %839 = vmatprep.subr.bf16.mxu0 0
        %840 = vmatpush1.bf16.msra.mxu0 0
        %841 = vmatprep.subr.bf16.mxu0 0
        %842 = vmatpush1.bf16.msra.mxu0 0
        %843 = vmatprep.subr.bf16.mxu0 0
        %844 = vmatpush1.bf16.msra.mxu0 0
        %845 = vmatprep.subr.bf16.mxu0 0
        %846 = vmatpush1.bf16.msra.mxu0 0
        %847 = vmatprep.subr.bf16.mxu0 0
        %848 = vmatpush1.bf16.msra.mxu0 0
        %849 = vmatprep.mubr.bf16.mxu0 0
        %850 = vmatmul.mubr.bf16.gmra.mrb[0].mxu0 %v703
        %v851 = vpop.f32.mrb[0].mxu0
        %v852 = vadd.f32 %v730, %v851
        %v853 = vpop.f32.mrb[0].mxu0
        %v854 = vadd.f32 %v734, %v853
        %v855 = vpop.f32.mrb[0].mxu0
        %v856 = vadd.f32 %v730, %v855
        %v857 = vpop.f32.mrb[0].mxu0
        %v858 = vadd.f32 %v734, %v857
        %859 = vdwg.mxu0
        %s860 = scalar_lea.vmem %s6, %s723
        %v861 = vld [vmem:[%s860] sm:$0x3]
        %s862 = scalar_lea.vmem %s7, %s723
        %v863 = vld [vmem:[%s862] sm:$0x3]
        %v864 = vadd.f32 %v852, %v854
        %865 = vadd.xlane.f32.xlu0 %v864
        %v866 = vpop.xlane.xlu0 %865
        %v867 = vadd.f32 %v856, %v858
        %868 = vadd.xlane.f32.xlu0 %v867
        %v869 = vpop.xlane.xlu0 %868
        %v870 = vrcp.pop 256.0
        %v871 = vmul.f32 %v866, %v870
        %v872 = vmul.f32 %v869, %v870
        %v873 = vsub.f32 %v852, %v871
        %v874 = vsub.f32 %v854, %v871
        %v875 = vsub.f32 %v856, %v872
        %v876 = vsub.f32 %v858, %v872
        %v877 = vmul.f32 %v873, %v873
        %v878 = vmul.f32 %v874, %v874
        %v879 = vmul.f32 %v875, %v875
        %v880 = vmul.f32 %v876, %v876
        %v881 = vadd.f32 %v877, %v878
        %882 = vadd.xlane.f32.xlu0 %v881
        %v883 = vpop.xlane.xlu0 %882
        %v884 = vadd.f32 %v879, %v880
        %885 = vadd.xlane.f32.xlu0 %v884
        %v886 = vpop.xlane.xlu0 %885
        %v887 = vmul.f32 %v883, %v870
        %v888 = vmul.f32 %v886, %v870
        %v889 = vadd.f32 %v887, 1e-05
        %v890 = vadd.f32 %v888, 1e-05
        %v891 = vrsqrt.pop %v889
        %v892 = vrsqrt.pop %v890
        %v893 = vmul.f32 %v873, %v891
        %v894 = vmul.f32 %v874, %v891
        %v895 = vmul.f32 %v875, %v892
        %v896 = vmul.f32 %v876, %v892
        %v898 = vlaneseq
        %v899 = vshrl.u32 %v898, 7
        %v900 = vsub.s32 0, %v899
        %v901 = vrot.slane %v861, %v900
        %v902 = vlaneseq
        %v903 = vshrl.u32 %v902, 7
        %v904 = vsub.s32 1, %v903
        %v905 = vrot.slane %v861, %v904
        %v908 = vmul.f32 %v893, %v901
        %v909 = vmul.f32 %v894, %v905
        %v910 = vmul.f32 %v895, %v901
        %v911 = vmul.f32 %v896, %v905
        %v913 = vlaneseq
        %v914 = vshrl.u32 %v913, 7
        %v915 = vsub.s32 0, %v914
        %v916 = vrot.slane %v863, %v915
        %v917 = vlaneseq
        %v918 = vshrl.u32 %v917, 7
        %v919 = vsub.s32 1, %v918
        %v920 = vrot.slane %v863, %v919
        %v923 = vadd.f32 %v908, %v916
        %v924 = vadd.f32 %v909, %v920
        %v925 = vadd.f32 %v910, %v916
        %v926 = vadd.f32 %v911, %v920
        %s927 = scalar_lea.vmem %s8, %s723
        %v928 = vld [vmem:[%s927] sm:$0x3]
        %s929 = scalar_lea.vmem %s9, %s723
        %v930 = vld [vmem:[%s929] sm:$0x3]
        %v931 = vadd.f32 %v923, %v924
        %932 = vadd.xlane.f32.xlu0 %v931
        %v933 = vpop.xlane.xlu0 %932
        %v934 = vadd.f32 %v925, %v926
        %935 = vadd.xlane.f32.xlu0 %v934
        %v936 = vpop.xlane.xlu0 %935
        %v937 = vmul.f32 %v933, %v870
        %v938 = vmul.f32 %v936, %v870
        %v939 = vsub.f32 %v923, %v937
        %v940 = vsub.f32 %v924, %v937
        %v941 = vsub.f32 %v925, %v938
        %v942 = vsub.f32 %v926, %v938
        %v943 = vmul.f32 %v939, %v939
        %v944 = vmul.f32 %v940, %v940
        %v945 = vmul.f32 %v941, %v941
        %v946 = vmul.f32 %v942, %v942
        %v947 = vadd.f32 %v943, %v944
        %948 = vadd.xlane.f32.xlu0 %v947
        %v949 = vpop.xlane.xlu0 %948
        %v950 = vadd.f32 %v945, %v946
        %951 = vadd.xlane.f32.xlu0 %v950
        %v952 = vpop.xlane.xlu0 %951
        %v953 = vmul.f32 %v949, %v870
        %v954 = vmul.f32 %v952, %v870
        %v955 = vadd.f32 %v953, 1e-05
        %v956 = vadd.f32 %v954, 1e-05
        %v957 = vrsqrt.pop %v955
        %v958 = vrsqrt.pop %v956
        %v959 = vmul.f32 %v939, %v957
        %v960 = vmul.f32 %v940, %v957
        %v961 = vmul.f32 %v941, %v958
        %v962 = vmul.f32 %v942, %v958
        %v964 = vlaneseq
        %v965 = vshrl.u32 %v964, 7
        %v966 = vsub.s32 0, %v965
        %v967 = vrot.slane %v928, %v966
        %v968 = vlaneseq
        %v969 = vshrl.u32 %v968, 7
        %v970 = vsub.s32 1, %v969
        %v971 = vrot.slane %v928, %v970
        %v974 = vmul.f32 %v959, %v967
        %v975 = vmul.f32 %v960, %v971
        %v976 = vmul.f32 %v961, %v967
        %v977 = vmul.f32 %v962, %v971
        %v979 = vlaneseq
        %v980 = vshrl.u32 %v979, 7
        %v981 = vsub.s32 0, %v980
        %v982 = vrot.slane %v930, %v981
        %v983 = vlaneseq
        %v984 = vshrl.u32 %v983, 7
        %v985 = vsub.s32 1, %v984
        %v986 = vrot.slane %v930, %v985
        %v989 = vadd.f32 %v974, %v982
        %v990 = vadd.f32 %v975, %v986
        %v991 = vadd.f32 %v976, %v982
        %v992 = vadd.f32 %v977, %v986
        %v993 = vxor.u32 %v989, 2147483648
        %v994 = vxor.u32 %v991, 2147483648
        %v995 = vmul.f32 %v993, 1.442695
        %v996 = vpow.pop %v995
        %v997 = vmul.f32 %v994, 1.442695
        %v998 = vpow.pop %v997
        %v999 = vadd.f32 %v996, 1.0
        %v1000 = vadd.f32 %v998, 1.0
        %v1001 = vrcp.pop %v999
        %v1002 = vmul.f32 1.0, %v1001
        %v1003 = vrcp.pop %v1000
        %v1004 = vmul.f32 1.0, %v1003
        %v1005 = vtanh.pop %v990
        %v1006 = vtanh.pop %v992
        %v1007 = vmul.f32 %v1002, %v1005
        %v1008 = vmul.f32 %v1004, %v1006
        %v1009 = vpack.c.bf16 %v1008, %v1007
        %s1010 = smul.addr %s704, 4
        %s1011 = scalar_lea.vmem [#allocation4], %s1010
        %v1012 = vld [vmem:[%s1011] sm:$0xff]
        %v1013 = vld [vmem:[%s1011 + $0x8] sm:$0xff]
        %v1014 = vld [vmem:[%s1011 + $0x10] sm:$0xff]
        %v1015 = vld [vmem:[%s1011 + $0x18] sm:$0xff]
        %v1016 = vld [vmem:[%s1011 + $0x20] sm:$0xff]
        %v1017 = vld [vmem:[%s1011 + $0x28] sm:$0xff]
        %v1018 = vld [vmem:[%s1011 + $0x30] sm:$0xff]
        %v1019 = vld [vmem:[%s1011 + $0x38] sm:$0xff]
        %v1020 = vld [vmem:[%s1011 + $0x40] sm:$0xff]
        %v1021 = vld [vmem:[%s1011 + $0x48] sm:$0xff]
        %v1022 = vld [vmem:[%s1011 + $0x50] sm:$0xff]
        %v1023 = vld [vmem:[%s1011 + $0x58] sm:$0xff]
        %v1024 = vld [vmem:[%s1011 + $0x60] sm:$0xff]
        %v1025 = vld [vmem:[%s1011 + $0x68] sm:$0xff]
        %v1026 = vld [vmem:[%s1011 + $0x70] sm:$0xff]
        %v1027 = vld [vmem:[%s1011 + $0x78] sm:$0xff]
        %s1028 = scalar_lea.vmem %s11, %s723
        %v1029 = vld [vmem:[%s1028] sm:$0x3]
        %v1031 = vlaneseq
        %v1032 = vshrl.u32 %v1031, 7
        %v1033 = vsub.s32 0, %v1032
        %v1034 = vrot.slane %v1029, %v1033
        %v1035 = vlaneseq
        %v1036 = vshrl.u32 %v1035, 7
        %v1037 = vsub.s32 1, %v1036
        %v1038 = vrot.slane %v1029, %v1037
        %v1057 = vunpack.c.l.b16 %v1012
        %v1058 = vunpack.c.h.b16 %v1012
        %v1059 = vunpack.c.l.b16 %v1013
        %v1060 = vunpack.c.h.b16 %v1013
        %v1061 = vunpack.c.l.b16 %v1014
        %v1062 = vunpack.c.h.b16 %v1014
        %v1063 = vunpack.c.l.b16 %v1015
        %v1064 = vunpack.c.h.b16 %v1015
        %v1065 = vunpack.c.l.b16 %v1016
        %v1066 = vunpack.c.h.b16 %v1016
        %v1067 = vunpack.c.l.b16 %v1017
        %v1068 = vunpack.c.h.b16 %v1017
        %v1069 = vunpack.c.l.b16 %v1018
        %v1070 = vunpack.c.h.b16 %v1018
        %v1071 = vunpack.c.l.b16 %v1019
        %v1072 = vunpack.c.h.b16 %v1019
        %v1073 = vunpack.c.l.b16 %v1020
        %v1074 = vunpack.c.h.b16 %v1020
        %v1075 = vunpack.c.l.b16 %v1021
        %v1076 = vunpack.c.h.b16 %v1021
        %v1077 = vunpack.c.l.b16 %v1022
        %v1078 = vunpack.c.h.b16 %v1022
        %v1079 = vunpack.c.l.b16 %v1023
        %v1080 = vunpack.c.h.b16 %v1023
        %v1081 = vunpack.c.l.b16 %v1024
        %v1082 = vunpack.c.h.b16 %v1024
        %v1083 = vunpack.c.l.b16 %v1025
        %v1084 = vunpack.c.h.b16 %v1025
        %v1085 = vunpack.c.l.b16 %v1026
        %v1086 = vunpack.c.h.b16 %v1026
        %v1087 = vunpack.c.l.b16 %v1027
        %v1088 = vunpack.c.h.b16 %v1027
        %v1089 = vpack.c.b16 %v1059, %v1057
        %v1090 = vpack.c.b16 %v1060, %v1058
        %v1091 = vpack.c.b16 %v1063, %v1061
        %v1092 = vpack.c.b16 %v1064, %v1062
        %v1093 = vpack.c.b16 %v1067, %v1065
        %v1094 = vpack.c.b16 %v1068, %v1066
        %v1095 = vpack.c.b16 %v1071, %v1069
        %v1096 = vpack.c.b16 %v1072, %v1070
        %v1097 = vpack.c.b16 %v1075, %v1073
        %v1098 = vpack.c.b16 %v1076, %v1074
        %v1099 = vpack.c.b16 %v1079, %v1077
        %v1100 = vpack.c.b16 %v1080, %v1078
        %v1101 = vpack.c.b16 %v1083, %v1081
        %v1102 = vpack.c.b16 %v1084, %v1082
        %v1103 = vpack.c.b16 %v1087, %v1085
        %v1104 = vpack.c.b16 %v1088, %v1086
        %1121 = vmatprep.subr.bf16.mxu0 %v1090
        %1122 = vmatpush1.bf16.msra.mxu0 %v1089
        %1123 = vmatprep.subr.bf16.mxu0 %v1092
        %1124 = vmatpush1.bf16.msra.mxu0 %v1091
        %1125 = vmatprep.subr.bf16.mxu0 %v1094
        %1126 = vmatpush1.bf16.msra.mxu0 %v1093
        %1127 = vmatprep.subr.bf16.mxu0 %v1096
        %1128 = vmatpush1.bf16.msra.mxu0 %v1095
        %1129 = vmatprep.subr.bf16.mxu0 %v1098
        %1130 = vmatpush1.bf16.msra.mxu0 %v1097
        %1131 = vmatprep.subr.bf16.mxu0 %v1100
        %1132 = vmatpush1.bf16.msra.mxu0 %v1099
        %1133 = vmatprep.subr.bf16.mxu0 %v1102
        %1134 = vmatpush1.bf16.msra.mxu0 %v1101
        %1135 = vmatprep.subr.bf16.mxu0 %v1104
        %1136 = vmatpush1.bf16.msra.mxu0 %v1103
        %1137 = vmatprep.subr.bf16.mxu0 0
        %1138 = vmatpush1.bf16.msra.mxu0 0
        %1139 = vmatprep.subr.bf16.mxu0 0
        %1140 = vmatpush1.bf16.msra.mxu0 0
        %1141 = vmatprep.subr.bf16.mxu0 0
        %1142 = vmatpush1.bf16.msra.mxu0 0
        %1143 = vmatprep.subr.bf16.mxu0 0
        %1144 = vmatpush1.bf16.msra.mxu0 0
        %1145 = vmatprep.subr.bf16.mxu0 0
        %1146 = vmatpush1.bf16.msra.mxu0 0
        %1147 = vmatprep.subr.bf16.mxu0 0
        %1148 = vmatpush1.bf16.msra.mxu0 0
        %1149 = vmatprep.subr.bf16.mxu0 0
        %1150 = vmatpush1.bf16.msra.mxu0 0
        %1151 = vmatprep.subr.bf16.mxu0 0
        %1152 = vmatpush1.bf16.msra.mxu0 0
        %1153 = vmatprep.mubr.bf16.mxu0 0
        %1154 = vmatmul.mubr.bf16.gmra.mrb[0].mxu0 %v1009
        %v1155 = vpop.f32.mrb[0].mxu0
        %v1156 = vadd.f32 %v1034, %v1155
        %v1157 = vpop.f32.mrb[0].mxu0
        %v1158 = vadd.f32 %v1038, %v1157
        %v1159 = vpop.f32.mrb[0].mxu0
        %v1160 = vadd.f32 %v1034, %v1159
        %v1161 = vpop.f32.mrb[0].mxu0
        %v1162 = vadd.f32 %v1038, %v1161
        %1163 = vdwg.mxu0
        %v1164 = vadd.f32 %v689, %v1156
        %v1165 = vadd.f32 %v690, %v1160
        %v1166 = vmul.f32 %v1164, 0.70710677
        %v1167 = vmul.f32 %v1165, 0.70710677
        %1168 = vst [vmem:[#allocation2] sm:$0xff] %v1166
        %1169 = vst [vmem:[#allocation2 + $0x8] sm:$0xff] %v1167
        %v1170 = vld [vmem:[#allocation3] sm:$0xff]
        %v1171 = vld [vmem:[#allocation3 + $0x8] sm:$0xff]
        %v1172 = vadd.f32 %v1170, %v1158
        %v1173 = vadd.f32 %v1171, %v1162
        %1174 = vst [vmem:[#allocation3] sm:$0xff] %v1172
        %1175 = vst [vmem:[#allocation3 + $0x8] sm:$0xff] %v1173
        %p1176 = scmp.eq.s32.totalorder %s40, 1
        // Predicated region
        $region101: #{sssd_forward.3} parent=87 // pred_check
          %p1177 = pneg %p1176
        $region102: #{sssd_forward.3} parent=87 // pred_check_branch
          %1179 = sbr.rel (%p1177) target = $region104
        $region103: #{sssd_forward.3} parent=87 // pred_region
          %v1180 = vld [vmem:[#allocation3] sm:$0xff]
          %v1181 = vld [vmem:[#allocation3 + $0x8] sm:$0xff]
          %v1182 = vmul.f32 %v1180, 0.70710677
          %v1183 = vmul.f32 %v1181, 0.70710677
          %v1184 = vpack.c.bf16 %v1183, %v1182
          %v1185 = vld [vmem:[%s12] sm:$0xf]
          %v1186 = vld [vmem:[%s12 + $0x4] sm:$0xf]
          %v1187 = vld [vmem:[%s12 + $0x8] sm:$0xf]
          %v1188 = vld [vmem:[%s12 + $0xc] sm:$0xf]
          %v1189 = vld [vmem:[%s12 + $0x10] sm:$0xf]
          %v1190 = vld [vmem:[%s12 + $0x14] sm:$0xf]
          %v1191 = vld [vmem:[%s12 + $0x18] sm:$0xf]
          %v1192 = vld [vmem:[%s12 + $0x1c] sm:$0xf]
          %v1193 = vld [vmem:[%s12 + $0x20] sm:$0xf]
          %v1194 = vld [vmem:[%s12 + $0x24] sm:$0xf]
          %v1195 = vld [vmem:[%s12 + $0x28] sm:$0xf]
          %v1196 = vld [vmem:[%s12 + $0x2c] sm:$0xf]
          %v1197 = vld [vmem:[%s12 + $0x30] sm:$0xf]
          %v1198 = vld [vmem:[%s12 + $0x34] sm:$0xf]
          %v1199 = vld [vmem:[%s12 + $0x38] sm:$0xf]
          %v1200 = vld [vmem:[%s12 + $0x3c] sm:$0xf]
          %v1201 = vld [vmem:[%s13] sm:$0x1]
          %v1203 = vlaneseq
          %v1204 = vshrl.u32 %v1203, 7
          %v1205 = vsub.s32 0, %v1204
          %v1206 = vrot.slane %v1201, %v1205
          %v1224 = vunpack.c.l.b16 %v1185
          %v1225 = vunpack.c.l.b16 %v1186
          %v1226 = vunpack.c.l.b16 %v1187
          %v1227 = vunpack.c.l.b16 %v1188
          %v1228 = vunpack.c.l.b16 %v1189
          %v1229 = vunpack.c.l.b16 %v1190
          %v1230 = vunpack.c.l.b16 %v1191
          %v1231 = vunpack.c.l.b16 %v1192
          %v1232 = vunpack.c.l.b16 %v1193
          %v1233 = vunpack.c.l.b16 %v1194
          %v1234 = vunpack.c.l.b16 %v1195
          %v1235 = vunpack.c.l.b16 %v1196
          %v1236 = vunpack.c.l.b16 %v1197
          %v1237 = vunpack.c.l.b16 %v1198
          %v1238 = vunpack.c.l.b16 %v1199
          %v1239 = vunpack.c.l.b16 %v1200
          %v1240 = vpack.c.b16 %v1225, %v1224
          %v1241 = vpack.c.b16 %v1227, %v1226
          %v1242 = vpack.c.b16 %v1229, %v1228
          %v1243 = vpack.c.b16 %v1231, %v1230
          %v1244 = vpack.c.b16 %v1233, %v1232
          %v1245 = vpack.c.b16 %v1235, %v1234
          %v1246 = vpack.c.b16 %v1237, %v1236
          %v1247 = vpack.c.b16 %v1239, %v1238
          %1256 = vmatprep.subr.bf16.mxu0 0
          %1257 = vmatpush1.bf16.msra.mxu0 %v1240
          %1258 = vmatprep.subr.bf16.mxu0 0
          %1259 = vmatpush1.bf16.msra.mxu0 %v1241
          %1260 = vmatprep.subr.bf16.mxu0 0
          %1261 = vmatpush1.bf16.msra.mxu0 %v1242
          %1262 = vmatprep.subr.bf16.mxu0 0
          %1263 = vmatpush1.bf16.msra.mxu0 %v1243
          %1264 = vmatprep.subr.bf16.mxu0 0
          %1265 = vmatpush1.bf16.msra.mxu0 %v1244
          %1266 = vmatprep.subr.bf16.mxu0 0
          %1267 = vmatpush1.bf16.msra.mxu0 %v1245
          %1268 = vmatprep.subr.bf16.mxu0 0
          %1269 = vmatpush1.bf16.msra.mxu0 %v1246
          %1270 = vmatprep.subr.bf16.mxu0 0
          %1271 = vmatpush1.bf16.msra.mxu0 %v1247
          %1272 = vmatprep.subr.bf16.mxu0 0
          %1273 = vmatpush1.bf16.msra.mxu0 0
          %1274 = vmatprep.subr.bf16.mxu0 0
          %1275 = vmatpush1.bf16.msra.mxu0 0
          %1276 = vmatprep.subr.bf16.mxu0 0
          %1277 = vmatpush1.bf16.msra.mxu0 0
          %1278 = vmatprep.subr.bf16.mxu0 0
          %1279 = vmatpush1.bf16.msra.mxu0 0
          %1280 = vmatprep.subr.bf16.mxu0 0
          %1281 = vmatpush1.bf16.msra.mxu0 0
          %1282 = vmatprep.subr.bf16.mxu0 0
          %1283 = vmatpush1.bf16.msra.mxu0 0
          %1284 = vmatprep.subr.bf16.mxu0 0
          %1285 = vmatpush1.bf16.msra.mxu0 0
          %1286 = vmatprep.subr.bf16.mxu0 0
          %1287 = vmatpush1.bf16.msra.mxu0 0
          %1288 = vmatprep.mubr.bf16.mxu0 0
          %1289 = vmatmul.mubr.bf16.gmra.mrb[0].mxu0 %v1184
          %v1290 = vpop.f32.mrb[0].mxu0
          %v1291 = vadd.f32 %v1206, %v1290
          %v1292 = vpop.f32.mrb[0].mxu0
          %v1293 = vpop.f32.mrb[0].mxu0
          %v1294 = vadd.f32 %v1206, %v1293
          %v1295 = vpop.f32.mrb[0].mxu0
          %1296 = vdwg.mxu0
          %v1297 = vmax.f32 %v1291, 0.0
          %v1298 = vmax.f32 %v1294, 0.0
          %v1299 = vld [vmem:[%s14] sm:$0x3]
          %v1300 = vpack.c.bf16 %v1298, %v1297
          %v1301 = vld [vmem:[%s15] sm:$0xf]
          %1303 = vset.pattern.permute.xlu0 0
          %1304 = vperm.xlu0 %1303, %v1301
          %v1305 = vpop.permute.xlu0 %1304
          %1307 = vmatprep.subr.bf16.mxu0 0
          %1308 = vmatpush1.bf16.xpose.msra.mxu0 %v1300
          %1309 = vmatprep.subr.bf16.mxu0 0
          %1310 = vmatpush1.bf16.xpose.msra.mxu0 0
          %1311 = vmatprep.subr.bf16.mxu0 0
          %1312 = vmatpush1.bf16.xpose.msra.mxu0 0
          %1313 = vmatprep.subr.bf16.mxu0 0
          %1314 = vmatpush1.bf16.xpose.msra.mxu0 0
          %1315 = vmatprep.subr.bf16.mxu0 0
          %1316 = vmatpush1.bf16.xpose.msra.mxu0 0
          %1317 = vmatprep.subr.bf16.mxu0 0
          %1318 = vmatpush1.bf16.xpose.msra.mxu0 0
          %1319 = vmatprep.subr.bf16.mxu0 0
          %1320 = vmatpush1.bf16.xpose.msra.mxu0 0
          %1321 = vmatprep.subr.bf16.mxu0 0
          %1322 = vmatpush1.bf16.xpose.msra.mxu0 0
          %1323 = vmatprep.subr.bf16.mxu0 0
          %1324 = vmatpush1.bf16.xpose.msra.mxu0 0
          %1325 = vmatprep.subr.bf16.mxu0 0
          %1326 = vmatpush1.bf16.xpose.msra.mxu0 0
          %1327 = vmatprep.subr.bf16.mxu0 0
          %1328 = vmatpush1.bf16.xpose.msra.mxu0 0
          %1329 = vmatprep.subr.bf16.mxu0 0
          %1330 = vmatpush1.bf16.xpose.msra.mxu0 0
          %1331 = vmatprep.subr.bf16.mxu0 0
          %1332 = vmatpush1.bf16.xpose.msra.mxu0 0
          %1333 = vmatprep.subr.bf16.mxu0 0
          %1334 = vmatpush1.bf16.xpose.msra.mxu0 0
          %1335 = vmatprep.subr.bf16.mxu0 0
          %1336 = vmatpush1.bf16.xpose.msra.mxu0 0
          %1337 = vmatprep.subr.bf16.mxu0 0
          %1338 = vmatpush1.bf16.xpose.msra.mxu0 0
          %1339 = vmatprep.mubr.bf16.mxu0 0
          %1340 = vmatmul.mubr.bf16.gmra.mrb[0].mxu0 %v1299
          %v1341 = vpop.f32.mrb[0].mxu0
          %v1342 = vadd.f32 %v1305, %v1341
          %v1343 = vpop.f32.mrb[0].mxu0
          %v1344 = vpop.f32.mrb[0].mxu0
          %v1345 = vpop.f32.mrb[0].mxu0
          %1346 = vdwg.mxu0
          %s1347 = sld [smem:[#allocation8 + %s38]]
          %v1348 = vstv %s1347
          %v1349 = vmul.f32 %v1342, %v1348
          %vm1350 = vcmask 125952
          %1351 = vst.msk [vmem:[%s597] sm:$0xf] %vm1350, %v1349
        $region104: #{sssd_forward.3} parent=87 // pred_fallthru
          _
        %s1352 = sand.u32 %s426, 1
        %s1353 = scalar_lea.sflag [#allocation6], %s1352
        %s1354 = sand.u32 %s426, 1
        %s1355 = smul.addr %s1354, 4
        %s1356 = scalar_lea.vmem [#allocation9], %s1355
        // Predicated region
        $region105: #{sssd_forward.3} parent=87 // pred_check
          %p1357 = pneg %p436
        $region106: #{sssd_forward.3} parent=87 // pred_check_branch
          %1359 = sbr.rel (%p1357) target = $region108
        $region107: #{sssd_forward.3} parent=87 // pred_region
          %s1361 = ssub.s32 64, 64
          %1362 = vsyncadd %s1353, %s1361
          %s1363 = sadd.s32 %s39, %s38
          %s1364 = smul.addr %s1363, 64
          %s1365 = scalar_lea.hbm %s17, %s1364
          %s1367 = sshll.u32 %s1356, 4
          %s1368 = int_to_ptr.vmem [resolvable:$true] %s1367
          %1370 = dma.vmem_to_hbm [thread:$0]  %s1368, 64, %s1365, %s1353
        $region108: #{sssd_forward.3} parent=87 // pred_fallthru
          _
      $region88: #{sssd_forward.3} parent=5 // pred_fallthru
        _
      %p1371 = scmp.le.s32.totalorder 2, %s28
      // Predicated region
      $region109: #{sssd_forward.3} parent=5 // pred_check
        %p1372 = pneg %p1371
      $region110: #{sssd_forward.3} parent=5 // pred_check_branch
        %1374 = sbr.rel (%p1372) target = $region112
      $region111: #{sssd_forward.3} parent=5 // pred_region
        %s1375 = ssub.s32 %s28, 2
        // Predicated region
        $region113: #{sssd_forward.3} parent=111 // pred_check
          %p1376 = pneg %p442
        $region114: #{sssd_forward.3} parent=111 // pred_check_branch
          %1378 = sbr.rel (%p1376) target = $region116
        $region115: #{sssd_forward.3} parent=111 // pred_region
          %s1379 = sand.u32 %s427, 1
          %s1380 = scalar_lea.sflag [#allocation6], %s1379
          %s1381 = sand.u32 %s427, 1
          %s1382 = smul.addr %s1381, 4
          %s1383 = scalar_lea.vmem [#allocation9], %s1382
          %1384 = dma.done %s1380, 64
        $region116: #{sssd_forward.3} parent=111 // pred_fallthru
          _
      $region112: #{sssd_forward.3} parent=5 // pred_fallthru
        _
    $region6: #{sssd_forward.3} parent=1 // loop_footer
      %s32 = sadd.s32 1, %s28
    $region7: #{sssd_forward.3} parent=1 // loop_footer_branch
      %27 = sbr.rel target = $region3
    $region8: #{sssd_forward.3} parent=1 // loop_exit
      _
    %1385 = vsyncpa [#allocation5], 1
    %s1386 = scalar_lea.sflag [#allocation5], 1
    %1387 = vsyncpa %s1386, 1
    %1388 = vsyncpa [#allocation6], 1
    %s1389 = scalar_lea.sflag [#allocation6], 1
    %1390 = vsyncpa %s1389, 1
    %1391 = vsyncpa [#allocation7], 1
    %s1392 = scalar_lea.sflag [#allocation7], 1
    %1393 = vsyncpa %s1392, 1

</llo_original>
